<compile_context>
chip_gen: v6e
topology: v6e:2x2x1
jax: 0.10.0
libtpu: 0.0.40
codegen_flags: <defaults>
</compile_context>

<pallas_src>
import jax
import jax.numpy as jnp
from jax.experimental import pallas as pl
from jax.experimental.pallas import tpu as pltpu

S = 32       # sequence length (after padding/truncation)
H = 32       # transformer hidden size
FC_HID = 128
FC_OUT = 1
LANE = 128   # lane-dense output width (FC_OUT padded up to one full vreg row)
BT = 16      # batch tile (grown per review; "parallel" grid axis)
ST = 16      # sequence tile ("arbitrary" reduction grid axis, bf16-pack aligned)


def _siamese_kernel(emb_ref, mask_ref, inv_ref, w1_ref, b1_ref, w2_ref, b2_ref,
                    out_ref, acc_ref):
    h = emb_ref.shape[-1] // 3          # hidden size per stream
    s_idx = pl.program_id(1)

    @pl.when(s_idx == 0)
    def _():
        acc_ref[...] = jnp.zeros_like(acc_ref)

    # Masked partial sums over this sequence tile, one stream at a time.  Each
    # stream is a static lane slice of the lane-concatenated embedding slab and
    # accumulates into the matching lane slice of the scratch accumulator, so
    # the finished accumulator IS the concatenated [ref | hyp_a | hyp_b]
    # feature vector -- no in-kernel concat and no expanded mask needed.
    # bf16 -> f32 upcast happens before the multiply (v5e has no bf16 VPU);
    # the VPU multiply + sublane reduce hides under the (halved) input DMA.
    for j in range(3):
        lanes = slice(j * h, (j + 1) * h)
        ej = emb_ref[:, :, lanes].astype(jnp.float32)      # [BT, ST, H]
        mj = mask_ref[:, :, j:j + 1]                       # [BT, ST, 1] lane bcast
        acc_ref[:, lanes] += jnp.sum(ej * mj, axis=1)      # [BT, H]

    @pl.when(s_idx == pl.num_programs(1) - 1)
    def _():
        # Finish mean pooling: scale each stream by its precomputed 1/len
        # (3-wide wrapper value -- no H-wide redundant den / reciprocal work).
        for j in range(3):
            lanes = slice(j * h, (j + 1) * h)
            acc_ref[:, lanes] *= inv_ref[:, j:j + 1]
        pooled = acc_ref[...]                               # [BT, 3H]

        # FC head: one MXU dot against the full W1, ReLU, then the lane-padded
        # output projection -> full (sublane, 128-lane) unmasked store.
        hid = jnp.dot(pooled, w1_ref[...], preferred_element_type=jnp.float32)
        hid = jnp.maximum(hid + b1_ref[...], 0.0)           # [BT, 128]
        out = jnp.dot(hid, w2_ref[...], preferred_element_type=jnp.float32)
        out_ref[...] = (out + b2_ref[...]).astype(out_ref.dtype)


def siamese_forward(ref_emb, ref_mask, ha_emb, ha_mask, hb_emb, hb_mask,
                    w1, b1, w2, b2, *, bt=BT, st=ST):
    B, s_len, h = ref_emb.shape
    assert h == H and B % bt == 0 and s_len % st == 0

    # ---- wrapper-side layout plumbing (pure XLA, outside the kernel) ----
    # One lane-concatenated [B, S, 3H] embedding slab, DMA'd to the kernel as
    # bf16.  Masks stay compact: [B, S, 3] (one column per stream) plus a
    # per-stream 1/clamp(len) -- mirrors torch's clamp(sum(mask), 1e-9).
    emb_cat = jnp.concatenate([ref_emb, ha_emb, hb_emb],
                              axis=-1).astype(jnp.bfloat16)
    mask_cat = jnp.stack([ref_mask, ha_mask, hb_mask],
                         axis=-1).astype(jnp.float32)
    inv_len = 1.0 / jnp.maximum(jnp.sum(mask_cat, axis=1), 1e-9)      # [B, 3]
    # Lane-dense padding of the 1-wide output head (sliced back after the call).
    w2p = jnp.zeros((FC_HID, LANE), jnp.float32).at[:, :FC_OUT].set(w2)
    b2p = jnp.zeros((1, LANE), jnp.float32).at[:, :FC_OUT].set(b2)

    grid = (B // bt, s_len // st)     # (batch: parallel, sequence: reduction)

    # Scoped-VMEM budget: double-buffered input/output blocks + weights + the
    # f32 accumulator, with headroom.  Re-derive when growing block shapes to
    # real encoder sizes (keep double-buffered blocks ~24-32 MiB for v7x).
    blk_bytes = (bt * st * 3 * H * 2                                   # emb (bf16)
                 + bt * st * 3 * 4                                     # compact mask
                 + bt * 3 * 4                                          # 1/len
                 + (3 * H * FC_HID + FC_HID + FC_HID * LANE + LANE) * 4  # weights
                 + bt * LANE * 4)                                      # output
    vmem_limit = int(min(48 * 1024 * 1024,
                         2 * blk_bytes + bt * 3 * H * 4 + 8 * 1024 * 1024))

    out = pl.pallas_call(
        _siamese_kernel,
        out_shape=jax.ShapeDtypeStruct((B, LANE), jnp.float32),
        grid=grid,
        in_specs=[
            pl.BlockSpec((bt, st, 3 * H), lambda i, s: (i, s, 0)),   # embeddings
            pl.BlockSpec((bt, st, 3), lambda i, s: (i, s, 0)),       # compact mask
            pl.BlockSpec((bt, 3), lambda i, s: (i, 0)),              # 1/len
            pl.BlockSpec((3 * H, FC_HID), lambda i, s: (0, 0)),      # W1 (whole)
            pl.BlockSpec((1, FC_HID), lambda i, s: (0, 0)),          # b1
            pl.BlockSpec((FC_HID, LANE), lambda i, s: (0, 0)),       # W2 (padded)
            pl.BlockSpec((1, LANE), lambda i, s: (0, 0)),            # b2 (padded)
        ],
        out_specs=pl.BlockSpec((bt, LANE), lambda i, s: (i, 0)),
        scratch_shapes=[pltpu.VMEM((bt, 3 * H), jnp.float32)],       # pooled acc
        compiler_params=pltpu.CompilerParams(
            dimension_semantics=("parallel", "arbitrary"),
            vmem_limit_bytes=vmem_limit),
    )(emb_cat, mask_cat, inv_len, w1, b1, w2p, b2p)

    return out[:, :FC_OUT]


def reference_forward(ref_emb, ref_mask, ha_emb, ha_mask, hb_emb, hb_mask,
                      w1, b1, w2, b2):
    def pool(emb, mask):
        m = mask.astype(jnp.float32)[:, :, None]
        e = emb.astype(jnp.float32)
        return jnp.sum(e * m, axis=1) / jnp.maximum(jnp.sum(m, axis=1), 1e-9)

    cat = jnp.concatenate([pool(ref_emb, ref_mask),
                           pool(ha_emb, ha_mask),
                           pool(hb_emb, hb_mask)], axis=1)
    hid = jnp.maximum(cat @ w1 + b1, 0.0)
    return hid @ w2 + b2


if __name__ == "__main__":
    B = 32   # 2 batch tiles x 2 sequence tiles -> exercises both grid axes

    key = jax.random.PRNGKey(0)
    keys = jax.random.split(key, 8)

    # "Transformer outputs": last_hidden_state per stream (bf16, as a real
    # encoder would hand over) + attention masks with varied padding lengths.
    ref_emb = jax.random.normal(keys[0], (B, S, H), jnp.float32).astype(jnp.bfloat16)
    ha_emb = jax.random.normal(keys[1], (B, S, H), jnp.float32).astype(jnp.bfloat16)
    hb_emb = jax.random.normal(keys[2], (B, S, H), jnp.float32).astype(jnp.bfloat16)
    lens = (jnp.arange(B) % S) + 1
    base_mask = (jnp.arange(S)[None, :] < lens[:, None]).astype(jnp.float32)
    ref_mask = base_mask
    ha_mask = jnp.flip(base_mask, axis=0)
    hb_mask = jnp.ones((B, S), jnp.float32)

    # Deterministic FC-head parameters (PyTorch-Linear-style uniform init).
    bound1 = 1.0 / (3 * H) ** 0.5
    w1 = jax.random.uniform(keys[3], (3 * H, FC_HID), jnp.float32, -bound1, bound1)
    b1 = jax.random.uniform(keys[4], (1, FC_HID), jnp.float32, -bound1, bound1)
    bound2 = 1.0 / FC_HID ** 0.5
    w2 = jax.random.uniform(keys[5], (FC_HID, FC_OUT), jnp.float32, -bound2, bound2)
    b2 = jax.random.uniform(keys[6], (1, FC_OUT), jnp.float32, -bound2, bound2)

    out = siamese_forward(ref_emb, ref_mask, ha_emb, ha_mask, hb_emb, hb_mask,
                          w1, b1, w2, b2)
    out = jax.block_until_ready(out)

    expected = reference_forward(ref_emb, ref_mask, ha_emb, ha_mask,
                                 hb_emb, hb_mask, w1, b1, w2, b2)
    assert out.shape == (B, FC_OUT)
    assert jnp.allclose(out, expected, atol=1e-5, rtol=1e-5), (
        float(jnp.max(jnp.abs(out - expected))))
    print("KERNEL_OK")
</pallas_src>

<mosaic_0001>
module attributes {stable_mosaic.version = 11 : i64} {
  func.func @_siamese_kernel(%arg0: i32, %arg1: i32, %arg2: memref<16x16x96xbf16, #tpu.memory_space<vmem>>, %arg3: memref<16x16x3xf32, #tpu.memory_space<vmem>>, %arg4: memref<16x3xf32, #tpu.memory_space<vmem>>, %arg5: memref<96x128xf32, #tpu.memory_space<vmem>>, %arg6: memref<1x128xf32, #tpu.memory_space<vmem>>, %arg7: memref<128x128xf32, #tpu.memory_space<vmem>>, %arg8: memref<1x128xf32, #tpu.memory_space<vmem>>, %arg9: memref<16x128xf32, #tpu.memory_space<vmem>>, %arg10: memref<16x96xf32, #tpu.memory_space<vmem>>) attributes {dimension_semantics = [#tpu.dimension_semantics<parallel>, #tpu.dimension_semantics<arbitrary>], iteration_bounds = array<i64: 2, 2>, scalar_prefetch = 0 : i64, scratch_operands = 1 : i64, tpu.core_type = #tpu.core_type<tc>, window_params = [{transform_indices = @transform_0, window_bounds = array<i64: 16, 16, 96>}, {transform_indices = @transform_1, window_bounds = array<i64: 16, 16, 3>}, {transform_indices = @transform_2, window_bounds = array<i64: 16, 3>}, {pipeline_mode = #tpu.pipeline_mode<synchronous>, transform_indices = @transform_3, window_bounds = array<i64: 96, 128>}, {pipeline_mode = #tpu.pipeline_mode<synchronous>, transform_indices = @transform_4, window_bounds = array<i64: 1, 128>}, {pipeline_mode = #tpu.pipeline_mode<synchronous>, transform_indices = @transform_5, window_bounds = array<i64: 128, 128>}, {pipeline_mode = #tpu.pipeline_mode<synchronous>, transform_indices = @transform_6, window_bounds = array<i64: 1, 128>}, {transform_indices = @transform_7, window_bounds = array<i64: 16, 128>}]} {
    %c0_i32 = arith.constant 0 : i32
    %0 = arith.cmpi eq, %arg1, %c0_i32 : i32
    %1 = arith.extui %0 : i1 to i32
    %c0_i32_0 = arith.constant 0 : i32
    %2 = arith.cmpi ne, %1, %c0_i32_0 : i32
    scf.if %2 {
      %cst_29 = arith.constant 0.000000e+00 : f32
      %33 = vector.broadcast %cst_29 : f32 to vector<16x96xf32>
      %c0_30 = arith.constant 0 : index
      %c0_31 = arith.constant 0 : index
      %34 = vector.load %arg10[%c0_30, %c0_31] : memref<16x96xf32, #tpu.memory_space<vmem>>, vector<16x96xf32>
      tpu.vector_store %arg10[%c0_30, %c0_31], %33 {strides = array<i32>} : memref<16x96xf32, #tpu.memory_space<vmem>>, vector<16x96xf32>,
    } else {
    }
    %c0 = arith.constant 0 : index
    %c0_1 = arith.constant 0 : index
    %c0_2 = arith.constant 0 : index
    %3 = vector.load %arg2[%c0, %c0_1, %c0_2] : memref<16x16x96xbf16, #tpu.memory_space<vmem>>, vector<16x16x32xbf16>
    %4 = arith.extf %3 : vector<16x16x32xbf16> to vector<16x16x32xf32>
    %c0_3 = arith.constant 0 : index
    %c0_4 = arith.constant 0 : index
    %c0_5 = arith.constant 0 : index
    %5 = vector.load %arg3[%c0_3, %c0_4, %c0_5] : memref<16x16x3xf32, #tpu.memory_space<vmem>>, vector<16x16x1xf32>
    %c0_6 = arith.constant 0 : index
    %c0_7 = arith.constant 0 : index
    %6 = vector.load %arg10[%c0_6, %c0_7] : memref<16x96xf32, #tpu.memory_space<vmem>>, vector<16x32xf32>
    %7 = vector.broadcast %5 : vector<16x16x1xf32> to vector<16x16x32xf32>
    %8 = arith.mulf %4, %7 : vector<16x16x32xf32>
    %cst = arith.constant dense<0.000000e+00> : vector<16x32xf32>
    %9 = vector.multi_reduction <add>, %8, %cst [1] : vector<16x16x32xf32> to vector<16x32xf32>
    %10 = arith.addf %6, %9 : vector<16x32xf32>
    %c0_8 = arith.constant 0 : index
    %c0_9 = arith.constant 0 : index
    %11 = vector.load %arg10[%c0_8, %c0_9] : memref<16x96xf32, #tpu.memory_space<vmem>>, vector<16x32xf32>
    tpu.vector_store %arg10[%c0_8, %c0_9], %10 {strides = array<i32>} : memref<16x96xf32, #tpu.memory_space<vmem>>, vector<16x32xf32>,
    %c0_10 = arith.constant 0 : index
    %c0_11 = arith.constant 0 : index
    %c32 = arith.constant 32 : index
    %12 = vector.load %arg2[%c0_10, %c0_11, %c32] : memref<16x16x96xbf16, #tpu.memory_space<vmem>>, vector<16x16x32xbf16>
    %13 = arith.extf %12 : vector<16x16x32xbf16> to vector<16x16x32xf32>
    %c0_12 = arith.constant 0 : index
    %c0_13 = arith.constant 0 : index
    %c1 = arith.constant 1 : index
    %14 = vector.load %arg3[%c0_12, %c0_13, %c1] : memref<16x16x3xf32, #tpu.memory_space<vmem>>, vector<16x16x1xf32>
    %c0_14 = arith.constant 0 : index
    %c32_15 = arith.constant 32 : index
    %15 = vector.load %arg10[%c0_14, %c32_15] : memref<16x96xf32, #tpu.memory_space<vmem>>, vector<16x32xf32>
    %16 = vector.broadcast %14 : vector<16x16x1xf32> to vector<16x16x32xf32>
    %17 = arith.mulf %13, %16 : vector<16x16x32xf32>
    %cst_16 = arith.constant dense<0.000000e+00> : vector<16x32xf32>
    %18 = vector.multi_reduction <add>, %17, %cst_16 [1] : vector<16x16x32xf32> to vector<16x32xf32>
    %19 = arith.addf %15, %18 : vector<16x32xf32>
    %c0_17 = arith.constant 0 : index
    %c32_18 = arith.constant 32 : index
    %20 = vector.load %arg10[%c0_17, %c32_18] : memref<16x96xf32, #tpu.memory_space<vmem>>, vector<16x32xf32>
    tpu.vector_store %arg10[%c0_17, %c32_18], %19 {strides = array<i32>} : memref<16x96xf32, #tpu.memory_space<vmem>>, vector<16x32xf32>,
    %c0_19 = arith.constant 0 : index
    %c0_20 = arith.constant 0 : index
    %c64 = arith.constant 64 : index
    %21 = vector.load %arg2[%c0_19, %c0_20, %c64] : memref<16x16x96xbf16, #tpu.memory_space<vmem>>, vector<16x16x32xbf16>
    %22 = arith.extf %21 : vector<16x16x32xbf16> to vector<16x16x32xf32>
    %c0_21 = arith.constant 0 : index
    %c0_22 = arith.constant 0 : index
    %c2 = arith.constant 2 : index
    %23 = vector.load %arg3[%c0_21, %c0_22, %c2] : memref<16x16x3xf32, #tpu.memory_space<vmem>>, vector<16x16x1xf32>
    %c0_23 = arith.constant 0 : index
    %c64_24 = arith.constant 64 : index
    %24 = vector.load %arg10[%c0_23, %c64_24] : memref<16x96xf32, #tpu.memory_space<vmem>>, vector<16x32xf32>
    %25 = vector.broadcast %23 : vector<16x16x1xf32> to vector<16x16x32xf32>
    %26 = arith.mulf %22, %25 : vector<16x16x32xf32>
    %cst_25 = arith.constant dense<0.000000e+00> : vector<16x32xf32>
    %27 = vector.multi_reduction <add>, %26, %cst_25 [1] : vector<16x16x32xf32> to vector<16x32xf32>
    %28 = arith.addf %24, %27 : vector<16x32xf32>
    %c0_26 = arith.constant 0 : index
    %c64_27 = arith.constant 64 : index
    %29 = vector.load %arg10[%c0_26, %c64_27] : memref<16x96xf32, #tpu.memory_space<vmem>>, vector<16x32xf32>
    tpu.vector_store %arg10[%c0_26, %c64_27], %28 {strides = array<i32>} : memref<16x96xf32, #tpu.memory_space<vmem>>, vector<16x32xf32>,
    %c1_i32 = arith.constant 1 : i32
    %30 = arith.cmpi eq, %arg1, %c1_i32 : i32
    %31 = arith.extui %30 : i1 to i32
    %c0_i32_28 = arith.constant 0 : i32
    %32 = arith.cmpi ne, %31, %c0_i32_28 : i32
    scf.if %32 {
      %c0_29 = arith.constant 0 : index
      %c0_30 = arith.constant 0 : index
      %33 = vector.load %arg10[%c0_29, %c0_30] : memref<16x96xf32, #tpu.memory_space<vmem>>, vector<16x32xf32>
      %c0_31 = arith.constant 0 : index
      %c0_32 = arith.constant 0 : index
      %34 = vector.load %arg4[%c0_31, %c0_32] : memref<16x3xf32, #tpu.memory_space<vmem>>, vector<16x1xf32>
      %35 = vector.broadcast %34 : vector<16x1xf32> to vector<16x32xf32>
      %36 = arith.mulf %33, %35 : vector<16x32xf32>
      %c0_33 = arith.constant 0 : index
      %c0_34 = arith.constant 0 : index
      %37 = vector.load %arg10[%c0_33, %c0_34] : memref<16x96xf32, #tpu.memory_space<vmem>>, vector<16x32xf32>
      tpu.vector_store %arg10[%c0_33, %c0_34], %36 {strides = array<i32>} : memref<16x96xf32, #tpu.memory_space<vmem>>, vector<16x32xf32>,
      %c0_35 = arith.constant 0 : index
      %c32_36 = arith.constant 32 : index
      %38 = vector.load %arg10[%c0_35, %c32_36] : memref<16x96xf32, #tpu.memory_space<vmem>>, vector<16x32xf32>
      %c0_37 = arith.constant 0 : index
      %c1_38 = arith.constant 1 : index
      %39 = vector.load %arg4[%c0_37, %c1_38] : memref<16x3xf32, #tpu.memory_space<vmem>>, vector<16x1xf32>
      %40 = vector.broadcast %39 : vector<16x1xf32> to vector<16x32xf32>
      %41 = arith.mulf %38, %40 : vector<16x32xf32>
      %c0_39 = arith.constant 0 : index
      %c32_40 = arith.constant 32 : index
      %42 = vector.load %arg10[%c0_39, %c32_40] : memref<16x96xf32, #tpu.memory_space<vmem>>, vector<16x32xf32>
      tpu.vector_store %arg10[%c0_39, %c32_40], %41 {strides = array<i32>} : memref<16x96xf32, #tpu.memory_space<vmem>>, vector<16x32xf32>,
      %c0_41 = arith.constant 0 : index
      %c64_42 = arith.constant 64 : index
      %43 = vector.load %arg10[%c0_41, %c64_42] : memref<16x96xf32, #tpu.memory_space<vmem>>, vector<16x32xf32>
      %c0_43 = arith.constant 0 : index
      %c2_44 = arith.constant 2 : index
      %44 = vector.load %arg4[%c0_43, %c2_44] : memref<16x3xf32, #tpu.memory_space<vmem>>, vector<16x1xf32>
      %45 = vector.broadcast %44 : vector<16x1xf32> to vector<16x32xf32>
      %46 = arith.mulf %43, %45 : vector<16x32xf32>
      %c0_45 = arith.constant 0 : index
      %c64_46 = arith.constant 64 : index
      %47 = vector.load %arg10[%c0_45, %c64_46] : memref<16x96xf32, #tpu.memory_space<vmem>>, vector<16x32xf32>
      tpu.vector_store %arg10[%c0_45, %c64_46], %46 {strides = array<i32>} : memref<16x96xf32, #tpu.memory_space<vmem>>, vector<16x32xf32>,
      %c0_47 = arith.constant 0 : index
      %c0_48 = arith.constant 0 : index
      %48 = vector.load %arg10[%c0_47, %c0_48] : memref<16x96xf32, #tpu.memory_space<vmem>>, vector<16x96xf32>
      %c0_49 = arith.constant 0 : index
      %c0_50 = arith.constant 0 : index
      %49 = vector.load %arg5[%c0_49, %c0_50] : memref<96x128xf32, #tpu.memory_space<vmem>>, vector<96x128xf32>
      %cst_51 = arith.constant dense<0.000000e+00> : vector<16x128xf32>
      %50 = tpu.matmul %48, %49, %cst_51 {dimension_numbers = #tpu.dot_dimension_numbers<[1], [0], [0], [1], [0, 0, 1, 1], [], []>} : vector<16x96xf32>, vector<96x128xf32>, vector<16x128xf32> -> vector<16x128xf32>
      %c0_52 = arith.constant 0 : index
      %c0_53 = arith.constant 0 : index
      %51 = vector.load %arg6[%c0_52, %c0_53] : memref<1x128xf32, #tpu.memory_space<vmem>>, vector<1x128xf32>
      %52 = vector.broadcast %51 : vector<1x128xf32> to vector<16x128xf32>
      %53 = arith.addf %50, %52 : vector<16x128xf32>
      %cst_54 = arith.constant 0.000000e+00 : f32
      %54 = vector.broadcast %cst_54 : f32 to vector<16x128xf32>
      %55 = arith.maximumf %53, %54 : vector<16x128xf32>
      %c0_55 = arith.constant 0 : index
      %c0_56 = arith.constant 0 : index
      %56 = vector.load %arg7[%c0_55, %c0_56] : memref<128x128xf32, #tpu.memory_space<vmem>>, vector<128x128xf32>
      %cst_57 = arith.constant dense<0.000000e+00> : vector<16x128xf32>
      %57 = tpu.matmul %55, %56, %cst_57 {dimension_numbers = #tpu.dot_dimension_numbers<[1], [0], [0], [1], [0, 0, 1, 1], [], []>} : vector<16x128xf32>, vector<128x128xf32>, vector<16x128xf32> -> vector<16x128xf32>
      %c0_58 = arith.constant 0 : index
      %c0_59 = arith.constant 0 : index
      %58 = vector.load %arg8[%c0_58, %c0_59] : memref<1x128xf32, #tpu.memory_space<vmem>>, vector<1x128xf32>
      %59 = vector.broadcast %58 : vector<1x128xf32> to vector<16x128xf32>
      %60 = arith.addf %57, %59 : vector<16x128xf32>
      %c0_60 = arith.constant 0 : index
      %c0_61 = arith.constant 0 : index
      %61 = vector.load %arg9[%c0_60, %c0_61] : memref<16x128xf32, #tpu.memory_space<vmem>>, vector<16x128xf32>
      tpu.vector_store %arg9[%c0_60, %c0_61], %60 {strides = array<i32>} : memref<16x128xf32, #tpu.memory_space<vmem>>, vector<16x128xf32>,
    } else {
    }
    return
  }
  func.func @transform_0(%arg0: i32, %arg1: i32) -> (i32, i32, i32) {
    %c0_i32 = arith.constant 0 : i32
    %c0_i32_0 = arith.constant 0 : i32
    return %arg0, %arg1, %c0_i32 : i32, i32, i32
  }
  func.func @transform_1(%arg0: i32, %arg1: i32) -> (i32, i32, i32) {
    %c0_i32 = arith.constant 0 : i32
    %c0_i32_0 = arith.constant 0 : i32
    return %arg0, %arg1, %c0_i32 : i32, i32, i32
  }
  func.func @transform_2(%arg0: i32, %arg1: i32) -> (i32, i32) {
    %c0_i32 = arith.constant 0 : i32
    %c0_i32_0 = arith.constant 0 : i32
    return %arg0, %c0_i32 : i32, i32
  }
  func.func @transform_3(%arg0: i32, %arg1: i32) -> (i32, i32) {
    %c0_i32 = arith.constant 0 : i32
    %c0_i32_0 = arith.constant 0 : i32
    %c0_i32_1 = arith.constant 0 : i32
    return %c0_i32, %c0_i32_0 : i32, i32
  }
  func.func @transform_4(%arg0: i32, %arg1: i32) -> (i32, i32) {
    %c0_i32 = arith.constant 0 : i32
    %c0_i32_0 = arith.constant 0 : i32
    %c0_i32_1 = arith.constant 0 : i32
    return %c0_i32, %c0_i32_0 : i32, i32
  }
  func.func @transform_5(%arg0: i32, %arg1: i32) -> (i32, i32) {
    %c0_i32 = arith.constant 0 : i32
    %c0_i32_0 = arith.constant 0 : i32
    %c0_i32_1 = arith.constant 0 : i32
    return %c0_i32, %c0_i32_0 : i32, i32
  }
  func.func @transform_6(%arg0: i32, %arg1: i32) -> (i32, i32) {
    %c0_i32 = arith.constant 0 : i32
    %c0_i32_0 = arith.constant 0 : i32
    %c0_i32_1 = arith.constant 0 : i32
    return %c0_i32, %c0_i32_0 : i32, i32
  }
  func.func @transform_7(%arg0: i32, %arg1: i32) -> (i32, i32) {
    %c0_i32 = arith.constant 0 : i32
    %c0_i32_0 = arith.constant 0 : i32
    return %arg0, %c0_i32 : i32, i32
  }
}

</mosaic_0001>

<llo_original>
// kernel: tpu_custom_call.1
$region0: #{tpu_custom_call.1}
  #allocation0 [shape = 'u32[]', space=smem, size = 0x4, offset = 0x4, fixed_abs, tag = 'smem constant byte address 0x4 - core index']
  #allocation1 [shape = 'u32[144,128]{1,0:T(1,128)}', space=vmem, size = 0x12000, scoped, tag = 'internal scratch']
  #allocation2 [shape = 'f32[16,96]{1,0:T(8,128)}', space=vmem, size = 0x2000, scoped, tag = 'scratch operand']
  %s0 = inlined_call_operand.vmem [shape: bf16[32,32,96], index: 0, kind: input, shape index: {}]
  %s1 = inlined_call_operand.vmem [shape: f32[32,32,3], index: 1, kind: input, shape index: {}]
  %s2 = inlined_call_operand.vmem [shape: f32[32,3], index: 2, kind: input, shape index: {}]
  %s3 = inlined_call_operand.vmem [shape: f32[96,128], index: 3, kind: input, shape index: {}]
  %s4 = inlined_call_operand.vmem [shape: f32[1,128], index: 4, kind: input, shape index: {}]
  %s5 = inlined_call_operand.vmem [shape: f32[128,128], index: 5, kind: input, shape index: {}]
  %s6 = inlined_call_operand.vmem [shape: f32[1,128], index: 6, kind: input, shape index: {}]
  %s7 = inlined_call_operand.hbm [shape: f32[32,128], index: 7, kind: output, shape index: {}]
  %s8 = sld [smem:[#allocation0]]
  $region148: #{tpu_custom_call.1} parent=0
    _
  %s10 = ssub.s32 1, %s8
  %s11 = scalar_select 0, %s10, %s8
  $region1: #{tpu_custom_call.1} parent=0
    #allocation3 [shape = 'u8[131072]{0}', space=vmem, size = 0x20000, scoped, tag = 'input window, operand 0']
    #allocation4 [shape = 'u8[262144]{0}', space=vmem, size = 0x40000, scoped, tag = 'input window, operand 1']
    #allocation5 [shape = 'u8[16384]{0}', space=vmem, size = 0x4000, scoped, tag = 'output window, operand 0']
    #allocation6 [shape = 's32[2]{0}', space=sflag, size = 0x8, scoped, tag = 'scoped memory for tpu_custom_call.1']
    %12 = vsyncpa [#allocation6], 0
    %s13 = scalar_lea.sflag [#allocation6], 1
    %14 = vsyncpa %s13, 0
    loop: start=0, step=1, limit=6
    $region2: #{tpu_custom_call.1} parent=1 // loop_pre_header
      _
    $region3: #{tpu_custom_call.1} parent=1 // loop_header
      %s16 = sphi 0, %s20
      %p17 = scmp.ge.s32.totalorder %s16, 6
      %s23 = sphi 0, %s35
      %s24 = sphi 0, %s31
      %s25 = sphi 0, %s23
      %s26 = sphi 0, %s24
      %s27 = sphi 0, %s25
      %s28 = sphi 0, %s26
      %s40 = sphi 0, %s42
      %s43 = sphi 0, %s40
      %s44 = sphi 0, %s43
      %s60 = sphi 0, %s44
      %s68 = sphi 0, %s70
      %s71 = sphi 0, %s68
      %s72 = sphi 0, %s71
      %s88 = sphi 0, %s72
      %s94 = sphi 0, %s96
      %s97 = sphi 0, %s94
      %s98 = sphi 0, %s97
      %s114 = sphi 0, %s98
      %s118 = sphi 0, %s118
      %s120 = sphi 0, %s118
      %s121 = sphi 0, %s120
      %s135 = sphi 0, %s121
      %s139 = sphi 0, %s139
      %s141 = sphi 0, %s139
      %s142 = sphi 0, %s141
      %s156 = sphi 0, %s142
      %s160 = sphi 0, %s160
      %s162 = sphi 0, %s160
      %s163 = sphi 0, %s162
      %s177 = sphi 0, %s163
      %s181 = sphi 0, %s181
      %s183 = sphi 0, %s181
      %s184 = sphi 0, %s183
      %s198 = sphi 0, %s184
      %s204 = sphi 0, %s206
      %s207 = sphi 0, %s204
      %s208 = sphi 0, %s207
      %s224 = sphi 0, %s208
    $region4: #{tpu_custom_call.1} parent=1 // loop_header_branch
      %19 = sbr.rel (%p17) target = $region8
    $region5: #{tpu_custom_call.1} parent=1 // loop_body
      %s21 = ssub.s32 %s16, 1
      %s22 = ssub.s32 %s16, 2
      %s29 = sadd.s32 1, %s24
      %p30 = scmp.ge.s32.totalorder %s29, 2
      %s31 = scalar_select %p30, 0, %s29
      %s32 = sadd.s32 1, %s23
      %s33 = scalar_select %p30, %s32, %s23
      %p34 = scmp.ge.s32.totalorder %s33, 2
      %s35 = scalar_select %p34, 0, %s33
      %s36 = ssub.s32 %s23, %s35
      %s37 = ssub.s32 %s24, %s31
      %s38 = sor.u32 %s36, %s37
      %p39 = scmp.eq.s32.totalorder %s38, 0
      %s41 = sadd.s32 %s40, 1
      %s42 = scalar_select %p39, %s40, %s41
      %p45 = pneg %p39
      %p46 = scmp.eq.s32.totalorder %s16, 3
      %p47 = por %p45, %p46
      %p48 = scmp.ne.s32.totalorder %s40, %s43
      %p49 = scmp.eq.s32.totalorder %s16, 0
      %p50 = por %p48, %p49
      %p51 = scmp.ne.s32.totalorder %s40, %s43
      %p52 = scmp.eq.s32.totalorder %s21, 3
      %p53 = por %p51, %p52
      %p54 = scmp.ne.s32.totalorder %s43, %s44
      %p55 = scmp.eq.s32.totalorder %s21, 0
      %p56 = por %p54, %p55
      %p57 = scmp.ne.s32.totalorder %s43, %s44
      %p58 = scmp.eq.s32.totalorder %s22, 3
      %p59 = por %p57, %p58
      %p61 = scmp.ne.s32.totalorder %s44, %s60
      %p62 = scmp.eq.s32.totalorder %s22, 0
      %p63 = por %p61, %p62
      %s64 = ssub.s32 %s23, %s35
      %s65 = ssub.s32 %s24, %s31
      %s66 = sor.u32 %s64, %s65
      %p67 = scmp.eq.s32.totalorder %s66, 0
      %s69 = sadd.s32 %s68, 1
      %s70 = scalar_select %p67, %s68, %s69
      %p73 = pneg %p67
      %p74 = scmp.eq.s32.totalorder %s16, 3
      %p75 = por %p73, %p74
      %p76 = scmp.ne.s32.totalorder %s68, %s71
      %p77 = scmp.eq.s32.totalorder %s16, 0
      %p78 = por %p76, %p77
      %p79 = scmp.ne.s32.totalorder %s68, %s71
      %p80 = scmp.eq.s32.totalorder %s21, 3
      %p81 = por %p79, %p80
      %p82 = scmp.ne.s32.totalorder %s71, %s72
      %p83 = scmp.eq.s32.totalorder %s21, 0
      %p84 = por %p82, %p83
      %p85 = scmp.ne.s32.totalorder %s71, %s72
      %p86 = scmp.eq.s32.totalorder %s22, 3
      %p87 = por %p85, %p86
      %p89 = scmp.ne.s32.totalorder %s72, %s88
      %p90 = scmp.eq.s32.totalorder %s22, 0
      %p91 = por %p89, %p90
      %s92 = ssub.s32 %s23, %s35
      %p93 = scmp.eq.s32.totalorder %s92, 0
      %s95 = sadd.s32 %s94, 1
      %s96 = scalar_select %p93, %s94, %s95
      %p99 = pneg %p93
      %p100 = scmp.eq.s32.totalorder %s16, 3
      %p101 = por %p99, %p100
      %p102 = scmp.ne.s32.totalorder %s94, %s97
      %p103 = scmp.eq.s32.totalorder %s16, 0
      %p104 = por %p102, %p103
      %p105 = scmp.ne.s32.totalorder %s94, %s97
      %p106 = scmp.eq.s32.totalorder %s21, 3
      %p107 = por %p105, %p106
      %p108 = scmp.ne.s32.totalorder %s97, %s98
      %p109 = scmp.eq.s32.totalorder %s21, 0
      %p110 = por %p108, %p109
      %p111 = scmp.ne.s32.totalorder %s97, %s98
      %p112 = scmp.eq.s32.totalorder %s22, 3
      %p113 = por %p111, %p112
      %p115 = scmp.ne.s32.totalorder %s98, %s114
      %p116 = scmp.eq.s32.totalorder %s22, 0
      %p117 = por %p115, %p116
      %s119 = sadd.s32 %s118, 1
      %p122 = scmp.eq.s32.totalorder %s16, 3
      %p123 = scmp.ne.s32.totalorder %s118, %s120
      %p124 = scmp.eq.s32.totalorder %s16, 0
      %p125 = por %p123, %p124
      %p126 = scmp.ne.s32.totalorder %s118, %s120
      %p127 = scmp.eq.s32.totalorder %s21, 3
      %p128 = por %p126, %p127
      %p129 = scmp.ne.s32.totalorder %s120, %s121
      %p130 = scmp.eq.s32.totalorder %s21, 0
      %p131 = por %p129, %p130
      %p132 = scmp.ne.s32.totalorder %s120, %s121
      %p133 = scmp.eq.s32.totalorder %s22, 3
      %p134 = por %p132, %p133
      %p136 = scmp.ne.s32.totalorder %s121, %s135
      %p137 = scmp.eq.s32.totalorder %s22, 0
      %p138 = por %p136, %p137
      %s140 = sadd.s32 %s139, 1
      %p143 = scmp.eq.s32.totalorder %s16, 3
      %p144 = scmp.ne.s32.totalorder %s139, %s141
      %p145 = scmp.eq.s32.totalorder %s16, 0
      %p146 = por %p144, %p145
      %p147 = scmp.ne.s32.totalorder %s139, %s141
      %p148 = scmp.eq.s32.totalorder %s21, 3
      %p149 = por %p147, %p148
      %p150 = scmp.ne.s32.totalorder %s141, %s142
      %p151 = scmp.eq.s32.totalorder %s21, 0
      %p152 = por %p150, %p151
      %p153 = scmp.ne.s32.totalorder %s141, %s142
      %p154 = scmp.eq.s32.totalorder %s22, 3
      %p155 = por %p153, %p154
      %p157 = scmp.ne.s32.totalorder %s142, %s156
      %p158 = scmp.eq.s32.totalorder %s22, 0
      %p159 = por %p157, %p158
      %s161 = sadd.s32 %s160, 1
      %p164 = scmp.eq.s32.totalorder %s16, 3
      %p165 = scmp.ne.s32.totalorder %s160, %s162
      %p166 = scmp.eq.s32.totalorder %s16, 0
      %p167 = por %p165, %p166
      %p168 = scmp.ne.s32.totalorder %s160, %s162
      %p169 = scmp.eq.s32.totalorder %s21, 3
      %p170 = por %p168, %p169
      %p171 = scmp.ne.s32.totalorder %s162, %s163
      %p172 = scmp.eq.s32.totalorder %s21, 0
      %p173 = por %p171, %p172
      %p174 = scmp.ne.s32.totalorder %s162, %s163
      %p175 = scmp.eq.s32.totalorder %s22, 3
      %p176 = por %p174, %p175
      %p178 = scmp.ne.s32.totalorder %s163, %s177
      %p179 = scmp.eq.s32.totalorder %s22, 0
      %p180 = por %p178, %p179
      %s182 = sadd.s32 %s181, 1
      %p185 = scmp.eq.s32.totalorder %s16, 3
      %p186 = scmp.ne.s32.totalorder %s181, %s183
      %p187 = scmp.eq.s32.totalorder %s16, 0
      %p188 = por %p186, %p187
      %p189 = scmp.ne.s32.totalorder %s181, %s183
      %p190 = scmp.eq.s32.totalorder %s21, 3
      %p191 = por %p189, %p190
      %p192 = scmp.ne.s32.totalorder %s183, %s184
      %p193 = scmp.eq.s32.totalorder %s21, 0
      %p194 = por %p192, %p193
      %p195 = scmp.ne.s32.totalorder %s183, %s184
      %p196 = scmp.eq.s32.totalorder %s22, 3
      %p197 = por %p195, %p196
      %p199 = scmp.ne.s32.totalorder %s184, %s198
      %p200 = scmp.eq.s32.totalorder %s22, 0
      %p201 = por %p199, %p200
      %s202 = ssub.s32 %s23, %s35
      %p203 = scmp.eq.s32.totalorder %s202, 0
      %s205 = sadd.s32 %s204, 1
      %s206 = scalar_select %p203, %s204, %s205
      %p209 = pneg %p203
      %p210 = scmp.eq.s32.totalorder %s16, 3
      %p211 = por %p209, %p210
      %p212 = scmp.ne.s32.totalorder %s204, %s207
      %p213 = scmp.eq.s32.totalorder %s16, 0
      %p214 = por %p212, %p213
      %p215 = scmp.ne.s32.totalorder %s204, %s207
      %p216 = scmp.eq.s32.totalorder %s21, 3
      %p217 = por %p215, %p216
      %p218 = scmp.ne.s32.totalorder %s207, %s208
      %p219 = scmp.eq.s32.totalorder %s21, 0
      %p220 = por %p218, %p219
      %p221 = scmp.ne.s32.totalorder %s207, %s208
      %p222 = scmp.eq.s32.totalorder %s22, 3
      %p223 = por %p221, %p222
      %p225 = scmp.ne.s32.totalorder %s208, %s224
      %p226 = scmp.eq.s32.totalorder %s22, 0
      %p227 = por %p225, %p226
      %p228 = scmp.le.s32.totalorder 1, %s16
      %p229 = scmp.lt.s32.totalorder %s16, 5
      %p230 = pnand %p228, %p229
      %p231 = pneg %p230
      // Predicated region
      $region9: #{tpu_custom_call.1} parent=5 // pred_check
        _
      $region10: #{tpu_custom_call.1} parent=5 // pred_check_branch
        %233 = sbr.rel (%p230) target = $region12
      $region11: #{tpu_custom_call.1} parent=5 // pred_region
        %s234 = ssub.s32 %s16, 1
        // Predicated region
        $region13: #{tpu_custom_call.1} parent=11 // pred_check
          %p235 = pneg %p131
        $region14: #{tpu_custom_call.1} parent=11 // pred_check_branch
          %237 = sbr.rel (%p235) target = $region16
        $region15: #{tpu_custom_call.1} parent=11 // pred_region
          _
        $region16: #{tpu_custom_call.1} parent=11 // pred_fallthru
          _
        // Predicated region
        $region17: #{tpu_custom_call.1} parent=11 // pred_check
          %p238 = pneg %p152
        $region18: #{tpu_custom_call.1} parent=11 // pred_check_branch
          %240 = sbr.rel (%p238) target = $region20
        $region19: #{tpu_custom_call.1} parent=11 // pred_region
          _
        $region20: #{tpu_custom_call.1} parent=11 // pred_fallthru
          _
        // Predicated region
        $region21: #{tpu_custom_call.1} parent=11 // pred_check
          %p241 = pneg %p173
        $region22: #{tpu_custom_call.1} parent=11 // pred_check_branch
          %243 = sbr.rel (%p241) target = $region24
        $region23: #{tpu_custom_call.1} parent=11 // pred_region
          _
        $region24: #{tpu_custom_call.1} parent=11 // pred_fallthru
          _
        // Predicated region
        $region25: #{tpu_custom_call.1} parent=11 // pred_check
          %p244 = pneg %p194
        $region26: #{tpu_custom_call.1} parent=11 // pred_check_branch
          %246 = sbr.rel (%p244) target = $region28
        $region27: #{tpu_custom_call.1} parent=11 // pred_region
          _
        $region28: #{tpu_custom_call.1} parent=11 // pred_fallthru
          _
      $region12: #{tpu_custom_call.1} parent=5 // pred_fallthru
        _
      %p247 = scmp.lt.s32.totalorder %s16, 4
      // Predicated region
      $region29: #{tpu_custom_call.1} parent=5 // pred_check
        %p248 = pneg %p247
      $region30: #{tpu_custom_call.1} parent=5 // pred_check_branch
        %250 = sbr.rel (%p248) target = $region32
      $region31: #{tpu_custom_call.1} parent=5 // pred_region
        // Predicated region
        $region33: #{tpu_custom_call.1} parent=31 // pred_check
          %p251 = pneg %p50
        $region34: #{tpu_custom_call.1} parent=31 // pred_check_branch
          %253 = sbr.rel (%p251) target = $region36
        $region35: #{tpu_custom_call.1} parent=31 // pred_region
          %s254 = sand.u32 %s40, 1
          %s255 = sand.u32 %s40, 1
          %s256 = smul.addr %s255, 128
          %s257 = scalar_lea.vmem [#allocation3], %s256
          %s258 = smul.u32 16, %s23
          %s259 = smul.u32 2, %s24
          %s260 = smul.addr %s258, 4
          %s261 = sadd.s32 %s259, %s260
          %s262 = smul.addr %s261, 4
          %s263 = scalar_lea.vmem %s0, %s262
          // Predicated region
          $region37: #{tpu_custom_call.1} parent=35 // pred_check
            _
          $region38: #{tpu_custom_call.1} parent=35 // pred_check_branch
            %265 = sbr.rel (0) target = $region40
          $region39: #{tpu_custom_call.1} parent=35 // pred_region
            // Predicated region
            $region41: #{tpu_custom_call.1} parent=39 // pred_check
              _
            $region42: #{tpu_custom_call.1} parent=39 // pred_check_branch
              %267 = sbr.rel target = $region44
            $region43: #{tpu_custom_call.1} parent=39 // pred_region
              // Predicated region
              $region56: #{tpu_custom_call.1} parent=43 // pred_check
                _
              $region57: #{tpu_custom_call.1} parent=43 // pred_check_branch
                %345 = sbr.rel (0) target = $region59
              $region58: #{tpu_custom_call.1} parent=43 // pred_region
                loop: start=0, step=1, limit=1
                $region60: #{tpu_custom_call.1} parent=58 // loop_pre_header
                  _
                $region61: #{tpu_custom_call.1} parent=58 // loop_header
                  %s347 = sphi 0, %s351
                  %p348 = scmp.ge.s32.totalorder %s347, 1
                  %s352 = sphi %s263, %s263
                  %s353 = sphi %s257, %s257
                $region62: #{tpu_custom_call.1} parent=58 // loop_header_branch
                  %350 = sbr.rel (%p348) target = $region66
                $region63: #{tpu_custom_call.1} parent=58 // loop_body
                  _
                $region64: #{tpu_custom_call.1} parent=58 // loop_footer
                  %s351 = sadd.s32 1, %s347
                $region65: #{tpu_custom_call.1} parent=58 // loop_footer_branch
                  %346 = sbr.rel target = $region61
                $region66: #{tpu_custom_call.1} parent=58 // loop_exit
                  _
                %s355 = ssub.s32 16, 1
                loop: start=0, step=1, limit=1
                $region67: #{tpu_custom_call.1} parent=58 // loop_pre_header
                  _
                $region68: #{tpu_custom_call.1} parent=58 // loop_header
                  %s357 = sphi 0, %s361
                  %p358 = scmp.ge.s32.totalorder %s357, 1
                  %s362 = sphi %s263, %s263
                  %s363 = sphi %s257, %s257
                $region69: #{tpu_custom_call.1} parent=58 // loop_header_branch
                  %360 = sbr.rel (%p358) target = $region73
                $region70: #{tpu_custom_call.1} parent=58 // loop_body
                  %v364 = vld [vmem:[%s362] sm:%s355]
                  %365 = vst [vmem:[%s363] sm:%s355] %v364
                  %v366 = vld [vmem:[%s362 + $0x4] sm:%s355]
                  %367 = vst [vmem:[%s363 + $0x4] sm:%s355] %v366
                  %v368 = vld [vmem:[%s362 + $0x10] sm:%s355]
                  %369 = vst [vmem:[%s363 + $0x8] sm:%s355] %v368
                  %v370 = vld [vmem:[%s362 + $0x14] sm:%s355]
                  %371 = vst [vmem:[%s363 + $0xc] sm:%s355] %v370
                  %v372 = vld [vmem:[%s362 + $0x20] sm:%s355]
                  %373 = vst [vmem:[%s363 + $0x10] sm:%s355] %v372
                  %v374 = vld [vmem:[%s362 + $0x24] sm:%s355]
                  %375 = vst [vmem:[%s363 + $0x14] sm:%s355] %v374
                  %v376 = vld [vmem:[%s362 + $0x30] sm:%s355]
                  %377 = vst [vmem:[%s363 + $0x18] sm:%s355] %v376
                  %v378 = vld [vmem:[%s362 + $0x34] sm:%s355]
                  %379 = vst [vmem:[%s363 + $0x1c] sm:%s355] %v378
                  %v380 = vld [vmem:[%s362 + $0x40] sm:%s355]
                  %381 = vst [vmem:[%s363 + $0x20] sm:%s355] %v380
                  %v382 = vld [vmem:[%s362 + $0x44] sm:%s355]
                  %383 = vst [vmem:[%s363 + $0x24] sm:%s355] %v382
                  %v384 = vld [vmem:[%s362 + $0x50] sm:%s355]
                  %385 = vst [vmem:[%s363 + $0x28] sm:%s355] %v384
                  %v386 = vld [vmem:[%s362 + $0x54] sm:%s355]
                  %387 = vst [vmem:[%s363 + $0x2c] sm:%s355] %v386
                  %v388 = vld [vmem:[%s362 + $0x60] sm:%s355]
                  %389 = vst [vmem:[%s363 + $0x30] sm:%s355] %v388
                  %v390 = vld [vmem:[%s362 + $0x64] sm:%s355]
                  %391 = vst [vmem:[%s363 + $0x34] sm:%s355] %v390
                  %v392 = vld [vmem:[%s362 + $0x70] sm:%s355]
                  %393 = vst [vmem:[%s363 + $0x38] sm:%s355] %v392
                  %v394 = vld [vmem:[%s362 + $0x74] sm:%s355]
                  %395 = vst [vmem:[%s363 + $0x3c] sm:%s355] %v394
                  %v396 = vld [vmem:[%s362 + $0x80] sm:%s355]
                  %397 = vst [vmem:[%s363 + $0x40] sm:%s355] %v396
                  %v398 = vld [vmem:[%s362 + $0x84] sm:%s355]
                  %399 = vst [vmem:[%s363 + $0x44] sm:%s355] %v398
                  %v400 = vld [vmem:[%s362 + $0x90] sm:%s355]
                  %401 = vst [vmem:[%s363 + $0x48] sm:%s355] %v400
                  %v402 = vld [vmem:[%s362 + $0x94] sm:%s355]
                  %403 = vst [vmem:[%s363 + $0x4c] sm:%s355] %v402
                  %v404 = vld [vmem:[%s362 + $0xa0] sm:%s355]
                  %405 = vst [vmem:[%s363 + $0x50] sm:%s355] %v404
                  %v406 = vld [vmem:[%s362 + $0xa4] sm:%s355]
                  %407 = vst [vmem:[%s363 + $0x54] sm:%s355] %v406
                  %v408 = vld [vmem:[%s362 + $0xb0] sm:%s355]
                  %409 = vst [vmem:[%s363 + $0x58] sm:%s355] %v408
                  %v410 = vld [vmem:[%s362 + $0xb4] sm:%s355]
                  %411 = vst [vmem:[%s363 + $0x5c] sm:%s355] %v410
                  %v412 = vld [vmem:[%s362 + $0xc0] sm:%s355]
                  %413 = vst [vmem:[%s363 + $0x60] sm:%s355] %v412
                  %v414 = vld [vmem:[%s362 + $0xc4] sm:%s355]
                  %415 = vst [vmem:[%s363 + $0x64] sm:%s355] %v414
                  %v416 = vld [vmem:[%s362 + $0xd0] sm:%s355]
                  %417 = vst [vmem:[%s363 + $0x68] sm:%s355] %v416
                  %v418 = vld [vmem:[%s362 + $0xd4] sm:%s355]
                  %419 = vst [vmem:[%s363 + $0x6c] sm:%s355] %v418
                  %v420 = vld [vmem:[%s362 + $0xe0] sm:%s355]
                  %421 = vst [vmem:[%s363 + $0x70] sm:%s355] %v420
                  %v422 = vld [vmem:[%s362 + $0xe4] sm:%s355]
                  %423 = vst [vmem:[%s363 + $0x74] sm:%s355] %v422
                  %v424 = vld [vmem:[%s362 + $0xf0] sm:%s355]
                  %425 = vst [vmem:[%s363 + $0x78] sm:%s355] %v424
                  %v426 = vld [vmem:[%s362 + $0xf4] sm:%s355]
                  %427 = vst [vmem:[%s363 + $0x7c] sm:%s355] %v426
                $region71: #{tpu_custom_call.1} parent=58 // loop_footer
                  %s361 = sadd.s32 1, %s357
                $region72: #{tpu_custom_call.1} parent=58 // loop_footer_branch
                  %356 = sbr.rel target = $region68
                $region73: #{tpu_custom_call.1} parent=58 // loop_exit
                  _
              $region59: #{tpu_custom_call.1} parent=43 // pred_fallthru
                _
            $region44: #{tpu_custom_call.1} parent=39 // pred_fallthru
              _
            // Predicated region
            $region45: #{tpu_custom_call.1} parent=39 // pred_check
              _
            $region46: #{tpu_custom_call.1} parent=39 // pred_check_branch
              %269 = sbr.rel (0) target = $region48
            $region47: #{tpu_custom_call.1} parent=39 // pred_region
              %s271 = ssub.s32 16, 1
              loop: start=0, step=1, limit=1
              $region49: #{tpu_custom_call.1} parent=47 // loop_pre_header
                _
              $region50: #{tpu_custom_call.1} parent=47 // loop_header
                %s273 = sphi 0, %s277
                %p274 = scmp.ge.s32.totalorder %s273, 1
                %s278 = sphi %s263, %s263
                %s279 = sphi %s257, %s257
              $region51: #{tpu_custom_call.1} parent=47 // loop_header_branch
                %276 = sbr.rel (%p274) target = $region55
              $region52: #{tpu_custom_call.1} parent=47 // loop_body
                %v280 = vld [vmem:[%s278] sm:%s271]
                %281 = vst [vmem:[%s279] sm:%s271] %v280
                %v282 = vld [vmem:[%s278 + $0x4] sm:%s271]
                %283 = vst [vmem:[%s279 + $0x4] sm:%s271] %v282
                %v284 = vld [vmem:[%s278 + $0x10] sm:%s271]
                %285 = vst [vmem:[%s279 + $0x8] sm:%s271] %v284
                %v286 = vld [vmem:[%s278 + $0x14] sm:%s271]
                %287 = vst [vmem:[%s279 + $0xc] sm:%s271] %v286
                %v288 = vld [vmem:[%s278 + $0x20] sm:%s271]
                %289 = vst [vmem:[%s279 + $0x10] sm:%s271] %v288
                %v290 = vld [vmem:[%s278 + $0x24] sm:%s271]
                %291 = vst [vmem:[%s279 + $0x14] sm:%s271] %v290
                %v292 = vld [vmem:[%s278 + $0x30] sm:%s271]
                %293 = vst [vmem:[%s279 + $0x18] sm:%s271] %v292
                %v294 = vld [vmem:[%s278 + $0x34] sm:%s271]
                %295 = vst [vmem:[%s279 + $0x1c] sm:%s271] %v294
                %v296 = vld [vmem:[%s278 + $0x40] sm:%s271]
                %297 = vst [vmem:[%s279 + $0x20] sm:%s271] %v296
                %v298 = vld [vmem:[%s278 + $0x44] sm:%s271]
                %299 = vst [vmem:[%s279 + $0x24] sm:%s271] %v298
                %v300 = vld [vmem:[%s278 + $0x50] sm:%s271]
                %301 = vst [vmem:[%s279 + $0x28] sm:%s271] %v300
                %v302 = vld [vmem:[%s278 + $0x54] sm:%s271]
                %303 = vst [vmem:[%s279 + $0x2c] sm:%s271] %v302
                %v304 = vld [vmem:[%s278 + $0x60] sm:%s271]
                %305 = vst [vmem:[%s279 + $0x30] sm:%s271] %v304
                %v306 = vld [vmem:[%s278 + $0x64] sm:%s271]
                %307 = vst [vmem:[%s279 + $0x34] sm:%s271] %v306
                %v308 = vld [vmem:[%s278 + $0x70] sm:%s271]
                %309 = vst [vmem:[%s279 + $0x38] sm:%s271] %v308
                %v310 = vld [vmem:[%s278 + $0x74] sm:%s271]
                %311 = vst [vmem:[%s279 + $0x3c] sm:%s271] %v310
                %v312 = vld [vmem:[%s278 + $0x80] sm:%s271]
                %313 = vst [vmem:[%s279 + $0x40] sm:%s271] %v312
                %v314 = vld [vmem:[%s278 + $0x84] sm:%s271]
                %315 = vst [vmem:[%s279 + $0x44] sm:%s271] %v314
                %v316 = vld [vmem:[%s278 + $0x90] sm:%s271]
                %317 = vst [vmem:[%s279 + $0x48] sm:%s271] %v316
                %v318 = vld [vmem:[%s278 + $0x94] sm:%s271]
                %319 = vst [vmem:[%s279 + $0x4c] sm:%s271] %v318
                %v320 = vld [vmem:[%s278 + $0xa0] sm:%s271]
                %321 = vst [vmem:[%s279 + $0x50] sm:%s271] %v320
                %v322 = vld [vmem:[%s278 + $0xa4] sm:%s271]
                %323 = vst [vmem:[%s279 + $0x54] sm:%s271] %v322
                %v324 = vld [vmem:[%s278 + $0xb0] sm:%s271]
                %325 = vst [vmem:[%s279 + $0x58] sm:%s271] %v324
                %v326 = vld [vmem:[%s278 + $0xb4] sm:%s271]
                %327 = vst [vmem:[%s279 + $0x5c] sm:%s271] %v326
                %v328 = vld [vmem:[%s278 + $0xc0] sm:%s271]
                %329 = vst [vmem:[%s279 + $0x60] sm:%s271] %v328
                %v330 = vld [vmem:[%s278 + $0xc4] sm:%s271]
                %331 = vst [vmem:[%s279 + $0x64] sm:%s271] %v330
                %v332 = vld [vmem:[%s278 + $0xd0] sm:%s271]
                %333 = vst [vmem:[%s279 + $0x68] sm:%s271] %v332
                %v334 = vld [vmem:[%s278 + $0xd4] sm:%s271]
                %335 = vst [vmem:[%s279 + $0x6c] sm:%s271] %v334
                %v336 = vld [vmem:[%s278 + $0xe0] sm:%s271]
                %337 = vst [vmem:[%s279 + $0x70] sm:%s271] %v336
                %v338 = vld [vmem:[%s278 + $0xe4] sm:%s271]
                %339 = vst [vmem:[%s279 + $0x74] sm:%s271] %v338
                %v340 = vld [vmem:[%s278 + $0xf0] sm:%s271]
                %341 = vst [vmem:[%s279 + $0x78] sm:%s271] %v340
                %v342 = vld [vmem:[%s278 + $0xf4] sm:%s271]
                %343 = vst [vmem:[%s279 + $0x7c] sm:%s271] %v342
              $region53: #{tpu_custom_call.1} parent=47 // loop_footer
                %s277 = sadd.s32 1, %s273
              $region54: #{tpu_custom_call.1} parent=47 // loop_footer_branch
                %272 = sbr.rel target = $region50
              $region55: #{tpu_custom_call.1} parent=47 // loop_exit
                _
            $region48: #{tpu_custom_call.1} parent=39 // pred_fallthru
              _
          $region40: #{tpu_custom_call.1} parent=35 // pred_fallthru
            _
          %428 = vnop
        $region36: #{tpu_custom_call.1} parent=31 // pred_fallthru
          _
        // Predicated region
        $region74: #{tpu_custom_call.1} parent=31 // pred_check
          %p429 = pneg %p78
        $region75: #{tpu_custom_call.1} parent=31 // pred_check_branch
          %431 = sbr.rel (%p429) target = $region77
        $region76: #{tpu_custom_call.1} parent=31 // pred_region
          %s432 = sand.u32 %s68, 1
          %s433 = sand.u32 %s68, 1
          %s434 = smul.addr %s433, 256
          %s435 = scalar_lea.vmem [#allocation4], %s434
          %s436 = smul.u32 16, %s23
          %s437 = smul.u32 2, %s24
          %s438 = smul.addr %s436, 4
          %s439 = sadd.s32 %s437, %s438
          %s440 = smul.addr %s439, 8
          %s441 = scalar_lea.vmem %s1, %s440
          // Predicated region
          $region78: #{tpu_custom_call.1} parent=76 // pred_check
            _
          $region79: #{tpu_custom_call.1} parent=76 // pred_check_branch
            %443 = sbr.rel (0) target = $region81
          $region80: #{tpu_custom_call.1} parent=76 // pred_region
            // Predicated region
            $region82: #{tpu_custom_call.1} parent=80 // pred_check
              _
            $region83: #{tpu_custom_call.1} parent=80 // pred_check_branch
              %445 = sbr.rel (0) target = $region85
            $region84: #{tpu_custom_call.1} parent=80 // pred_region
              // Predicated region
              $region97: #{tpu_custom_call.1} parent=84 // pred_check
                _
              $region98: #{tpu_custom_call.1} parent=84 // pred_check_branch
                %523 = sbr.rel (0) target = $region100
              $region99: #{tpu_custom_call.1} parent=84 // pred_region
                loop: start=0, step=1, limit=1
                $region101: #{tpu_custom_call.1} parent=99 // loop_pre_header
                  _
                $region102: #{tpu_custom_call.1} parent=99 // loop_header
                  %s525 = sphi 0, %s529
                  %p526 = scmp.ge.s32.totalorder %s525, 1
                  %s530 = sphi %s441, %s441
                  %s531 = sphi %s435, %s435
                $region103: #{tpu_custom_call.1} parent=99 // loop_header_branch
                  %528 = sbr.rel (%p526) target = $region107
                $region104: #{tpu_custom_call.1} parent=99 // loop_body
                  %v532 = vld [vmem:[%s530] sm:$0xff]
                  %533 = vst [vmem:[%s531] sm:$0xff] %v532
                  %v534 = vld [vmem:[%s530 + $0x8] sm:$0xff]
                  %535 = vst [vmem:[%s531 + $0x8] sm:$0xff] %v534
                  %v536 = vld [vmem:[%s530 + $0x20] sm:$0xff]
                  %537 = vst [vmem:[%s531 + $0x10] sm:$0xff] %v536
                  %v538 = vld [vmem:[%s530 + $0x28] sm:$0xff]
                  %539 = vst [vmem:[%s531 + $0x18] sm:$0xff] %v538
                  %v540 = vld [vmem:[%s530 + $0x40] sm:$0xff]
                  %541 = vst [vmem:[%s531 + $0x20] sm:$0xff] %v540
                  %v542 = vld [vmem:[%s530 + $0x48] sm:$0xff]
                  %543 = vst [vmem:[%s531 + $0x28] sm:$0xff] %v542
                  %v544 = vld [vmem:[%s530 + $0x60] sm:$0xff]
                  %545 = vst [vmem:[%s531 + $0x30] sm:$0xff] %v544
                  %v546 = vld [vmem:[%s530 + $0x68] sm:$0xff]
                  %547 = vst [vmem:[%s531 + $0x38] sm:$0xff] %v546
                  %v548 = vld [vmem:[%s530 + $0x80] sm:$0xff]
                  %549 = vst [vmem:[%s531 + $0x40] sm:$0xff] %v548
                  %v550 = vld [vmem:[%s530 + $0x88] sm:$0xff]
                  %551 = vst [vmem:[%s531 + $0x48] sm:$0xff] %v550
                  %v552 = vld [vmem:[%s530 + $0xa0] sm:$0xff]
                  %553 = vst [vmem:[%s531 + $0x50] sm:$0xff] %v552
                  %v554 = vld [vmem:[%s530 + $0xa8] sm:$0xff]
                  %555 = vst [vmem:[%s531 + $0x58] sm:$0xff] %v554
                  %v556 = vld [vmem:[%s530 + $0xc0] sm:$0xff]
                  %557 = vst [vmem:[%s531 + $0x60] sm:$0xff] %v556
                  %v558 = vld [vmem:[%s530 + $0xc8] sm:$0xff]
                  %559 = vst [vmem:[%s531 + $0x68] sm:$0xff] %v558
                  %v560 = vld [vmem:[%s530 + $0xe0] sm:$0xff]
                  %561 = vst [vmem:[%s531 + $0x70] sm:$0xff] %v560
                  %v562 = vld [vmem:[%s530 + $0xe8] sm:$0xff]
                  %563 = vst [vmem:[%s531 + $0x78] sm:$0xff] %v562
                  %v564 = vld [vmem:[%s530 + $0x100] sm:$0xff]
                  %565 = vst [vmem:[%s531 + $0x80] sm:$0xff] %v564
                  %v566 = vld [vmem:[%s530 + $0x108] sm:$0xff]
                  %567 = vst [vmem:[%s531 + $0x88] sm:$0xff] %v566
                  %v568 = vld [vmem:[%s530 + $0x120] sm:$0xff]
                  %569 = vst [vmem:[%s531 + $0x90] sm:$0xff] %v568
                  %v570 = vld [vmem:[%s530 + $0x128] sm:$0xff]
                  %571 = vst [vmem:[%s531 + $0x98] sm:$0xff] %v570
                  %v572 = vld [vmem:[%s530 + $0x140] sm:$0xff]
                  %573 = vst [vmem:[%s531 + $0xa0] sm:$0xff] %v572
                  %v574 = vld [vmem:[%s530 + $0x148] sm:$0xff]
                  %575 = vst [vmem:[%s531 + $0xa8] sm:$0xff] %v574
                  %v576 = vld [vmem:[%s530 + $0x160] sm:$0xff]
                  %577 = vst [vmem:[%s531 + $0xb0] sm:$0xff] %v576
                  %v578 = vld [vmem:[%s530 + $0x168] sm:$0xff]
                  %579 = vst [vmem:[%s531 + $0xb8] sm:$0xff] %v578
                  %v580 = vld [vmem:[%s530 + $0x180] sm:$0xff]
                  %581 = vst [vmem:[%s531 + $0xc0] sm:$0xff] %v580
                  %v582 = vld [vmem:[%s530 + $0x188] sm:$0xff]
                  %583 = vst [vmem:[%s531 + $0xc8] sm:$0xff] %v582
                  %v584 = vld [vmem:[%s530 + $0x1a0] sm:$0xff]
                  %585 = vst [vmem:[%s531 + $0xd0] sm:$0xff] %v584
                  %v586 = vld [vmem:[%s530 + $0x1a8] sm:$0xff]
                  %587 = vst [vmem:[%s531 + $0xd8] sm:$0xff] %v586
                  %v588 = vld [vmem:[%s530 + $0x1c0] sm:$0xff]
                  %589 = vst [vmem:[%s531 + $0xe0] sm:$0xff] %v588
                  %v590 = vld [vmem:[%s530 + $0x1c8] sm:$0xff]
                  %591 = vst [vmem:[%s531 + $0xe8] sm:$0xff] %v590
                  %v592 = vld [vmem:[%s530 + $0x1e0] sm:$0xff]
                  %593 = vst [vmem:[%s531 + $0xf0] sm:$0xff] %v592
                  %v594 = vld [vmem:[%s530 + $0x1e8] sm:$0xff]
                  %595 = vst [vmem:[%s531 + $0xf8] sm:$0xff] %v594
                $region105: #{tpu_custom_call.1} parent=99 // loop_footer
                  %s529 = sadd.s32 1, %s525
                $region106: #{tpu_custom_call.1} parent=99 // loop_footer_branch
                  %524 = sbr.rel target = $region102
                $region107: #{tpu_custom_call.1} parent=99 // loop_exit
                  _
              $region100: #{tpu_custom_call.1} parent=84 // pred_fallthru
                _
              // Predicated region
              $region108: #{tpu_custom_call.1} parent=84 // pred_check
                _
              $region109: #{tpu_custom_call.1} parent=84 // pred_check_branch
                %597 = sbr.rel target = $region111
              $region110: #{tpu_custom_call.1} parent=84 // pred_region
                _
              $region111: #{tpu_custom_call.1} parent=84 // pred_fallthru
                _
            $region85: #{tpu_custom_call.1} parent=80 // pred_fallthru
              _
            // Predicated region
            $region86: #{tpu_custom_call.1} parent=80 // pred_check
              _
            $region87: #{tpu_custom_call.1} parent=80 // pred_check_branch
              %447 = sbr.rel target = $region89
            $region88: #{tpu_custom_call.1} parent=80 // pred_region
              %s449 = ssub.s32 256, 1
              loop: start=0, step=1, limit=1
              $region90: #{tpu_custom_call.1} parent=88 // loop_pre_header
                _
              $region91: #{tpu_custom_call.1} parent=88 // loop_header
                %s451 = sphi 0, %s455
                %p452 = scmp.ge.s32.totalorder %s451, 1
                %s456 = sphi %s441, %s441
                %s457 = sphi %s435, %s435
              $region92: #{tpu_custom_call.1} parent=88 // loop_header_branch
                %454 = sbr.rel (%p452) target = $region96
              $region93: #{tpu_custom_call.1} parent=88 // loop_body
                %v458 = vld [vmem:[%s456] sm:%s449]
                %459 = vst [vmem:[%s457] sm:%s449] %v458
                %v460 = vld [vmem:[%s456 + $0x8] sm:%s449]
                %461 = vst [vmem:[%s457 + $0x8] sm:%s449] %v460
                %v462 = vld [vmem:[%s456 + $0x20] sm:%s449]
                %463 = vst [vmem:[%s457 + $0x10] sm:%s449] %v462
                %v464 = vld [vmem:[%s456 + $0x28] sm:%s449]
                %465 = vst [vmem:[%s457 + $0x18] sm:%s449] %v464
                %v466 = vld [vmem:[%s456 + $0x40] sm:%s449]
                %467 = vst [vmem:[%s457 + $0x20] sm:%s449] %v466
                %v468 = vld [vmem:[%s456 + $0x48] sm:%s449]
                %469 = vst [vmem:[%s457 + $0x28] sm:%s449] %v468
                %v470 = vld [vmem:[%s456 + $0x60] sm:%s449]
                %471 = vst [vmem:[%s457 + $0x30] sm:%s449] %v470
                %v472 = vld [vmem:[%s456 + $0x68] sm:%s449]
                %473 = vst [vmem:[%s457 + $0x38] sm:%s449] %v472
                %v474 = vld [vmem:[%s456 + $0x80] sm:%s449]
                %475 = vst [vmem:[%s457 + $0x40] sm:%s449] %v474
                %v476 = vld [vmem:[%s456 + $0x88] sm:%s449]
                %477 = vst [vmem:[%s457 + $0x48] sm:%s449] %v476
                %v478 = vld [vmem:[%s456 + $0xa0] sm:%s449]
                %479 = vst [vmem:[%s457 + $0x50] sm:%s449] %v478
                %v480 = vld [vmem:[%s456 + $0xa8] sm:%s449]
                %481 = vst [vmem:[%s457 + $0x58] sm:%s449] %v480
                %v482 = vld [vmem:[%s456 + $0xc0] sm:%s449]
                %483 = vst [vmem:[%s457 + $0x60] sm:%s449] %v482
                %v484 = vld [vmem:[%s456 + $0xc8] sm:%s449]
                %485 = vst [vmem:[%s457 + $0x68] sm:%s449] %v484
                %v486 = vld [vmem:[%s456 + $0xe0] sm:%s449]
                %487 = vst [vmem:[%s457 + $0x70] sm:%s449] %v486
                %v488 = vld [vmem:[%s456 + $0xe8] sm:%s449]
                %489 = vst [vmem:[%s457 + $0x78] sm:%s449] %v488
                %v490 = vld [vmem:[%s456 + $0x100] sm:%s449]
                %491 = vst [vmem:[%s457 + $0x80] sm:%s449] %v490
                %v492 = vld [vmem:[%s456 + $0x108] sm:%s449]
                %493 = vst [vmem:[%s457 + $0x88] sm:%s449] %v492
                %v494 = vld [vmem:[%s456 + $0x120] sm:%s449]
                %495 = vst [vmem:[%s457 + $0x90] sm:%s449] %v494
                %v496 = vld [vmem:[%s456 + $0x128] sm:%s449]
                %497 = vst [vmem:[%s457 + $0x98] sm:%s449] %v496
                %v498 = vld [vmem:[%s456 + $0x140] sm:%s449]
                %499 = vst [vmem:[%s457 + $0xa0] sm:%s449] %v498
                %v500 = vld [vmem:[%s456 + $0x148] sm:%s449]
                %501 = vst [vmem:[%s457 + $0xa8] sm:%s449] %v500
                %v502 = vld [vmem:[%s456 + $0x160] sm:%s449]
                %503 = vst [vmem:[%s457 + $0xb0] sm:%s449] %v502
                %v504 = vld [vmem:[%s456 + $0x168] sm:%s449]
                %505 = vst [vmem:[%s457 + $0xb8] sm:%s449] %v504
                %v506 = vld [vmem:[%s456 + $0x180] sm:%s449]
                %507 = vst [vmem:[%s457 + $0xc0] sm:%s449] %v506
                %v508 = vld [vmem:[%s456 + $0x188] sm:%s449]
                %509 = vst [vmem:[%s457 + $0xc8] sm:%s449] %v508
                %v510 = vld [vmem:[%s456 + $0x1a0] sm:%s449]
                %511 = vst [vmem:[%s457 + $0xd0] sm:%s449] %v510
                %v512 = vld [vmem:[%s456 + $0x1a8] sm:%s449]
                %513 = vst [vmem:[%s457 + $0xd8] sm:%s449] %v512
                %v514 = vld [vmem:[%s456 + $0x1c0] sm:%s449]
                %515 = vst [vmem:[%s457 + $0xe0] sm:%s449] %v514
                %v516 = vld [vmem:[%s456 + $0x1c8] sm:%s449]
                %517 = vst [vmem:[%s457 + $0xe8] sm:%s449] %v516
                %v518 = vld [vmem:[%s456 + $0x1e0] sm:%s449]
                %519 = vst [vmem:[%s457 + $0xf0] sm:%s449] %v518
                %v520 = vld [vmem:[%s456 + $0x1e8] sm:%s449]
                %521 = vst [vmem:[%s457 + $0xf8] sm:%s449] %v520
              $region94: #{tpu_custom_call.1} parent=88 // loop_footer
                %s455 = sadd.s32 1, %s451
              $region95: #{tpu_custom_call.1} parent=88 // loop_footer_branch
                %450 = sbr.rel target = $region91
              $region96: #{tpu_custom_call.1} parent=88 // loop_exit
                _
            $region89: #{tpu_custom_call.1} parent=80 // pred_fallthru
              _
          $region81: #{tpu_custom_call.1} parent=76 // pred_fallthru
            _
          %598 = vnop
        $region77: #{tpu_custom_call.1} parent=31 // pred_fallthru
          _
        // Predicated region
        $region112: #{tpu_custom_call.1} parent=31 // pred_check
          %p599 = pneg %p104
        $region113: #{tpu_custom_call.1} parent=31 // pred_check_branch
          %601 = sbr.rel (%p599) target = $region115
        $region114: #{tpu_custom_call.1} parent=31 // pred_region
          %s602 = smul.u32 2, %s23
          %p603 = scmp.lt.s32.totalorder %s602, 3
          %s604 = scalar_select %p603, %s602, 3
          %s605 = smul.addr %s604, 8
          %s606 = scalar_lea.vmem %s2, %s605
          %s607 = smul.u32 2, %s23
        $region115: #{tpu_custom_call.1} parent=31 // pred_fallthru
          _
      $region32: #{tpu_custom_call.1} parent=5 // pred_fallthru
        _
      %p608 = scmp.le.s32.totalorder 1, %s16
      %p609 = scmp.lt.s32.totalorder %s16, 5
      %p610 = pnand %p608, %p609
      %p611 = pneg %p610
      // Predicated region
      $region116: #{tpu_custom_call.1} parent=5 // pred_check
        _
      $region117: #{tpu_custom_call.1} parent=5 // pred_check_branch
        %613 = sbr.rel (%p610) target = $region119
      $region118: #{tpu_custom_call.1} parent=5 // pred_region
        %s614 = ssub.s32 %s16, 1
        %s615 = sand.u32 %s43, 1
        %s616 = sand.u32 %s43, 1
        %s617 = smul.addr %s616, 128
        %s618 = scalar_lea.vmem [#allocation3], %s617
        // Predicated region
        $region120: #{tpu_custom_call.1} parent=118 // pred_check
          %p619 = pneg %p56
        $region121: #{tpu_custom_call.1} parent=118 // pred_check_branch
          %621 = sbr.rel (%p619) target = $region123
        $region122: #{tpu_custom_call.1} parent=118 // pred_region
          _
        $region123: #{tpu_custom_call.1} parent=118 // pred_fallthru
          _
        %s622 = sand.u32 %s71, 1
        %s623 = sand.u32 %s71, 1
        %s624 = smul.addr %s623, 256
        %s625 = scalar_lea.vmem [#allocation4], %s624
        // Predicated region
        $region124: #{tpu_custom_call.1} parent=118 // pred_check
          %p626 = pneg %p84
        $region125: #{tpu_custom_call.1} parent=118 // pred_check_branch
          %628 = sbr.rel (%p626) target = $region127
        $region126: #{tpu_custom_call.1} parent=118 // pred_region
          _
        $region127: #{tpu_custom_call.1} parent=118 // pred_fallthru
          _
        %s629 = sand.u32 %s43, 1
        %s630 = sand.u32 %s43, 1
        %s631 = smul.addr %s630, 128
        %s632 = scalar_lea.vmem [#allocation3], %s631
        %p633 = pneg %p56
        %p634 = pneg %p53
        %s635 = sand.u32 %s71, 1
        %s636 = sand.u32 %s71, 1
        %s637 = smul.addr %s636, 256
        %s638 = scalar_lea.vmem [#allocation4], %s637
        %p639 = pneg %p84
        %p640 = pneg %p81
        %s641 = smul.u32 2, %s25
        %p642 = scmp.lt.s32.totalorder %s641, 3
        %s643 = scalar_select %p642, %s641, 3
        %s644 = smul.addr %s643, 8
        %s645 = scalar_lea.vmem %s2, %s644
        %p646 = pneg %p110
        %p647 = pneg %p107
        %p648 = pneg %p131
        %p649 = pneg %p128
        %p650 = pneg %p152
        %p651 = pneg %p149
        %p652 = pneg %p173
        %p653 = pneg %p170
        %p654 = pneg %p194
        %p655 = pneg %p191
        %p656 = pneg %p220
        %p657 = pneg %p217
        %s658 = sand.u32 %s207, 1
        %s659 = scalar_lea.sflag [#allocation6], %s658
        %s660 = sand.u32 %s207, 1
        %s661 = smul.addr %s660, 16
        %s662 = scalar_lea.vmem [#allocation5], %s661
        %s663 = smul.u32 16, %s25
        %s664 = smul.u32 2, %s26
        %s665 = smul.u32 16, %s25
        %s666 = smul.u32 2, %s26
        %s667 = smul.u32 2, %s25
        %p668 = scmp.lt.s32.totalorder %s667, 3
        %s669 = scalar_select %p668, %s667, 3
        %s670 = smul.addr %s669, 8
        %s671 = scalar_lea.vmem %s2, %s670
        %s672 = smul.u32 2, %s25
        %s673 = smul.u32 2, %s25
        %p674 = scmp.eq.s32.totalorder %s26, 0
        // Predicated region
        $region128: #{tpu_custom_call.1} parent=118 // pred_check
          %p675 = pneg %p674
        $region129: #{tpu_custom_call.1} parent=118 // pred_check_branch
          %677 = sbr.rel (%p675) target = $region131
        $region130: #{tpu_custom_call.1} parent=118 // pred_region
          %vm678 = vcmask 785408
          %679 = vst.msk [vmem:[#allocation2] sm:$0xff] %vm678, 0.0
          %680 = vst.msk [vmem:[#allocation2 + $0x8] sm:$0xff] %vm678, 0.0
        $region131: #{tpu_custom_call.1} parent=118 // pred_fallthru
          _
        %v681 = vld [vmem:[%s618] sm:$0xf]
        %v682 = vld [vmem:[%s618 + $0x4] sm:$0xf]
        %v683 = vld [vmem:[%s618 + $0x8] sm:$0xf]
        %v684 = vld [vmem:[%s618 + $0xc] sm:$0xf]
        %v685 = vld [vmem:[%s618 + $0x10] sm:$0xf]
        %v686 = vld [vmem:[%s618 + $0x14] sm:$0xf]
        %v687 = vld [vmem:[%s618 + $0x18] sm:$0xf]
        %v688 = vld [vmem:[%s618 + $0x1c] sm:$0xf]
        %v689 = vld [vmem:[%s618 + $0x20] sm:$0xf]
        %v690 = vld [vmem:[%s618 + $0x24] sm:$0xf]
        %v691 = vld [vmem:[%s618 + $0x28] sm:$0xf]
        %v692 = vld [vmem:[%s618 + $0x2c] sm:$0xf]
        %v693 = vld [vmem:[%s618 + $0x30] sm:$0xf]
        %v694 = vld [vmem:[%s618 + $0x34] sm:$0xf]
        %v695 = vld [vmem:[%s618 + $0x38] sm:$0xf]
        %v696 = vld [vmem:[%s618 + $0x3c] sm:$0xf]
        %v697 = vld [vmem:[%s618 + $0x40] sm:$0xf]
        %v698 = vld [vmem:[%s618 + $0x44] sm:$0xf]
        %v699 = vld [vmem:[%s618 + $0x48] sm:$0xf]
        %v700 = vld [vmem:[%s618 + $0x4c] sm:$0xf]
        %v701 = vld [vmem:[%s618 + $0x50] sm:$0xf]
        %v702 = vld [vmem:[%s618 + $0x54] sm:$0xf]
        %v703 = vld [vmem:[%s618 + $0x58] sm:$0xf]
        %v704 = vld [vmem:[%s618 + $0x5c] sm:$0xf]
        %v705 = vld [vmem:[%s618 + $0x60] sm:$0xf]
        %v706 = vld [vmem:[%s618 + $0x64] sm:$0xf]
        %v707 = vld [vmem:[%s618 + $0x68] sm:$0xf]
        %v708 = vld [vmem:[%s618 + $0x6c] sm:$0xf]
        %v709 = vld [vmem:[%s618 + $0x70] sm:$0xf]
        %v710 = vld [vmem:[%s618 + $0x74] sm:$0xf]
        %v711 = vld [vmem:[%s618 + $0x78] sm:$0xf]
        %v712 = vld [vmem:[%s618 + $0x7c] sm:$0xf]
        %v713 = vunpack.c.l.bf16 %v681
        %v714 = vunpack.c.l.bf16 %v682
        %v715 = vunpack.c.l.bf16 %v683
        %v716 = vunpack.c.l.bf16 %v684
        %v717 = vunpack.c.l.bf16 %v685
        %v718 = vunpack.c.l.bf16 %v686
        %v719 = vunpack.c.l.bf16 %v687
        %v720 = vunpack.c.l.bf16 %v688
        %v721 = vunpack.c.l.bf16 %v689
        %v722 = vunpack.c.l.bf16 %v690
        %v723 = vunpack.c.l.bf16 %v691
        %v724 = vunpack.c.l.bf16 %v692
        %v725 = vunpack.c.l.bf16 %v693
        %v726 = vunpack.c.l.bf16 %v694
        %v727 = vunpack.c.l.bf16 %v695
        %v728 = vunpack.c.l.bf16 %v696
        %v729 = vunpack.c.l.bf16 %v697
        %v730 = vunpack.c.l.bf16 %v698
        %v731 = vunpack.c.l.bf16 %v699
        %v732 = vunpack.c.l.bf16 %v700
        %v733 = vunpack.c.l.bf16 %v701
        %v734 = vunpack.c.l.bf16 %v702
        %v735 = vunpack.c.l.bf16 %v703
        %v736 = vunpack.c.l.bf16 %v704
        %v737 = vunpack.c.l.bf16 %v705
        %v738 = vunpack.c.l.bf16 %v706
        %v739 = vunpack.c.l.bf16 %v707
        %v740 = vunpack.c.l.bf16 %v708
        %v741 = vunpack.c.l.bf16 %v709
        %v742 = vunpack.c.l.bf16 %v710
        %v743 = vunpack.c.l.bf16 %v711
        %v744 = vunpack.c.l.bf16 %v712
        %v745 = vld [vmem:[%s625] sm:$0xff]
        %v746 = vld [vmem:[%s625 + $0x8] sm:$0xff]
        %v747 = vld [vmem:[%s625 + $0x10] sm:$0xff]
        %v748 = vld [vmem:[%s625 + $0x18] sm:$0xff]
        %v749 = vld [vmem:[%s625 + $0x20] sm:$0xff]
        %v750 = vld [vmem:[%s625 + $0x28] sm:$0xff]
        %v751 = vld [vmem:[%s625 + $0x30] sm:$0xff]
        %v752 = vld [vmem:[%s625 + $0x38] sm:$0xff]
        %v753 = vld [vmem:[%s625 + $0x40] sm:$0xff]
        %v754 = vld [vmem:[%s625 + $0x48] sm:$0xff]
        %v755 = vld [vmem:[%s625 + $0x50] sm:$0xff]
        %v756 = vld [vmem:[%s625 + $0x58] sm:$0xff]
        %v757 = vld [vmem:[%s625 + $0x60] sm:$0xff]
        %v758 = vld [vmem:[%s625 + $0x68] sm:$0xff]
        %v759 = vld [vmem:[%s625 + $0x70] sm:$0xff]
        %v760 = vld [vmem:[%s625 + $0x78] sm:$0xff]
        %v761 = vld [vmem:[%s625 + $0x80] sm:$0xff]
        %v762 = vld [vmem:[%s625 + $0x88] sm:$0xff]
        %v763 = vld [vmem:[%s625 + $0x90] sm:$0xff]
        %v764 = vld [vmem:[%s625 + $0x98] sm:$0xff]
        %v765 = vld [vmem:[%s625 + $0xa0] sm:$0xff]
        %v766 = vld [vmem:[%s625 + $0xa8] sm:$0xff]
        %v767 = vld [vmem:[%s625 + $0xb0] sm:$0xff]
        %v768 = vld [vmem:[%s625 + $0xb8] sm:$0xff]
        %v769 = vld [vmem:[%s625 + $0xc0] sm:$0xff]
        %v770 = vld [vmem:[%s625 + $0xc8] sm:$0xff]
        %v771 = vld [vmem:[%s625 + $0xd0] sm:$0xff]
        %v772 = vld [vmem:[%s625 + $0xd8] sm:$0xff]
        %v773 = vld [vmem:[%s625 + $0xe0] sm:$0xff]
        %v774 = vld [vmem:[%s625 + $0xe8] sm:$0xff]
        %v775 = vld [vmem:[%s625 + $0xf0] sm:$0xff]
        %v776 = vld [vmem:[%s625 + $0xf8] sm:$0xff]
        %v777 = vld [vmem:[#allocation2] sm:$0xff]
        %v778 = vld [vmem:[#allocation2 + $0x8] sm:$0xff]
        %780 = vset.pattern.permute.xlu0 0
        %781 = vperm.xlu0 %780, %v745
        %v782 = vpop.permute.xlu0 %781
        %785 = vset.pattern.permute.xlu0 0
        %786 = vperm.xlu0 %785, %v746
        %v787 = vpop.permute.xlu0 %786
        %790 = vset.pattern.permute.xlu0 0
        %791 = vperm.xlu0 %790, %v747
        %v792 = vpop.permute.xlu0 %791
        %795 = vset.pattern.permute.xlu0 0
        %796 = vperm.xlu0 %795, %v748
        %v797 = vpop.permute.xlu0 %796
        %800 = vset.pattern.permute.xlu0 0
        %801 = vperm.xlu0 %800, %v749
        %v802 = vpop.permute.xlu0 %801
        %805 = vset.pattern.permute.xlu0 0
        %806 = vperm.xlu0 %805, %v750
        %v807 = vpop.permute.xlu0 %806
        %810 = vset.pattern.permute.xlu0 0
        %811 = vperm.xlu0 %810, %v751
        %v812 = vpop.permute.xlu0 %811
        %815 = vset.pattern.permute.xlu0 0
        %816 = vperm.xlu0 %815, %v752
        %v817 = vpop.permute.xlu0 %816
        %820 = vset.pattern.permute.xlu0 0
        %821 = vperm.xlu0 %820, %v753
        %v822 = vpop.permute.xlu0 %821
        %825 = vset.pattern.permute.xlu0 0
        %826 = vperm.xlu0 %825, %v754
        %v827 = vpop.permute.xlu0 %826
        %830 = vset.pattern.permute.xlu0 0
        %831 = vperm.xlu0 %830, %v755
        %v832 = vpop.permute.xlu0 %831
        %835 = vset.pattern.permute.xlu0 0
        %836 = vperm.xlu0 %835, %v756
        %v837 = vpop.permute.xlu0 %836
        %840 = vset.pattern.permute.xlu0 0
        %841 = vperm.xlu0 %840, %v757
        %v842 = vpop.permute.xlu0 %841
        %845 = vset.pattern.permute.xlu0 0
        %846 = vperm.xlu0 %845, %v758
        %v847 = vpop.permute.xlu0 %846
        %850 = vset.pattern.permute.xlu0 0
        %851 = vperm.xlu0 %850, %v759
        %v852 = vpop.permute.xlu0 %851
        %855 = vset.pattern.permute.xlu0 0
        %856 = vperm.xlu0 %855, %v760
        %v857 = vpop.permute.xlu0 %856
        %860 = vset.pattern.permute.xlu0 0
        %861 = vperm.xlu0 %860, %v761
        %v862 = vpop.permute.xlu0 %861
        %865 = vset.pattern.permute.xlu0 0
        %866 = vperm.xlu0 %865, %v762
        %v867 = vpop.permute.xlu0 %866
        %870 = vset.pattern.permute.xlu0 0
        %871 = vperm.xlu0 %870, %v763
        %v872 = vpop.permute.xlu0 %871
        %875 = vset.pattern.permute.xlu0 0
        %876 = vperm.xlu0 %875, %v764
        %v877 = vpop.permute.xlu0 %876
        %880 = vset.pattern.permute.xlu0 0
        %881 = vperm.xlu0 %880, %v765
        %v882 = vpop.permute.xlu0 %881
        %885 = vset.pattern.permute.xlu0 0
        %886 = vperm.xlu0 %885, %v766
        %v887 = vpop.permute.xlu0 %886
        %890 = vset.pattern.permute.xlu0 0
        %891 = vperm.xlu0 %890, %v767
        %v892 = vpop.permute.xlu0 %891
        %895 = vset.pattern.permute.xlu0 0
        %896 = vperm.xlu0 %895, %v768
        %v897 = vpop.permute.xlu0 %896
        %900 = vset.pattern.permute.xlu0 0
        %901 = vperm.xlu0 %900, %v769
        %v902 = vpop.permute.xlu0 %901
        %905 = vset.pattern.permute.xlu0 0
        %906 = vperm.xlu0 %905, %v770
        %v907 = vpop.permute.xlu0 %906
        %910 = vset.pattern.permute.xlu0 0
        %911 = vperm.xlu0 %910, %v771
        %v912 = vpop.permute.xlu0 %911
        %915 = vset.pattern.permute.xlu0 0
        %916 = vperm.xlu0 %915, %v772
        %v917 = vpop.permute.xlu0 %916
        %920 = vset.pattern.permute.xlu0 0
        %921 = vperm.xlu0 %920, %v773
        %v922 = vpop.permute.xlu0 %921
        %925 = vset.pattern.permute.xlu0 0
        %926 = vperm.xlu0 %925, %v774
        %v927 = vpop.permute.xlu0 %926
        %930 = vset.pattern.permute.xlu0 0
        %931 = vperm.xlu0 %930, %v775
        %v932 = vpop.permute.xlu0 %931
        %935 = vset.pattern.permute.xlu0 0
        %936 = vperm.xlu0 %935, %v776
        %v937 = vpop.permute.xlu0 %936
        %v939 = vmul.f32 %v713, %v782
        %v940 = vmul.f32 %v714, %v787
        %v941 = vmul.f32 %v715, %v792
        %v942 = vmul.f32 %v716, %v797
        %v943 = vmul.f32 %v717, %v802
        %v944 = vmul.f32 %v718, %v807
        %v945 = vmul.f32 %v719, %v812
        %v946 = vmul.f32 %v720, %v817
        %v947 = vmul.f32 %v721, %v822
        %v948 = vmul.f32 %v722, %v827
        %v949 = vmul.f32 %v723, %v832
        %v950 = vmul.f32 %v724, %v837
        %v951 = vmul.f32 %v725, %v842
        %v952 = vmul.f32 %v726, %v847
        %v953 = vmul.f32 %v727, %v852
        %v954 = vmul.f32 %v728, %v857
        %v955 = vmul.f32 %v729, %v862
        %v956 = vmul.f32 %v730, %v867
        %v957 = vmul.f32 %v731, %v872
        %v958 = vmul.f32 %v732, %v877
        %v959 = vmul.f32 %v733, %v882
        %v960 = vmul.f32 %v734, %v887
        %v961 = vmul.f32 %v735, %v892
        %v962 = vmul.f32 %v736, %v897
        %v963 = vmul.f32 %v737, %v902
        %v964 = vmul.f32 %v738, %v907
        %v965 = vmul.f32 %v739, %v912
        %v966 = vmul.f32 %v740, %v917
        %v967 = vmul.f32 %v741, %v922
        %v968 = vmul.f32 %v742, %v927
        %v969 = vmul.f32 %v743, %v932
        %v970 = vmul.f32 %v744, %v937
        %vm971 = vcmask 261120
        %v972 = vsel %vm971, %v939, 0.0
        %v973 = vsel %vm971, %v940, 0.0
        %v974 = vadd.f32 %v972, %v973
        %v975 = vrot.slane %v974, 4
        %v976 = vadd.f32 %v974, %v975
        %v977 = vrot.slane %v976, 2
        %v978 = vadd.f32 %v976, %v977
        %v979 = vrot.slane %v978, 1
        %v980 = vadd.f32 %v978, %v979
        %v981 = vsel %vm971, %v941, 0.0
        %v982 = vsel %vm971, %v942, 0.0
        %v983 = vadd.f32 %v981, %v982
        %v984 = vrot.slane %v983, 4
        %v985 = vadd.f32 %v983, %v984
        %v986 = vrot.slane %v985, 2
        %v987 = vadd.f32 %v985, %v986
        %v988 = vrot.slane %v987, 1
        %v989 = vadd.f32 %v987, %v988
        %v990 = vsel %vm971, %v943, 0.0
        %v991 = vsel %vm971, %v944, 0.0
        %v992 = vadd.f32 %v990, %v991
        %v993 = vrot.slane %v992, 4
        %v994 = vadd.f32 %v992, %v993
        %v995 = vrot.slane %v994, 2
        %v996 = vadd.f32 %v994, %v995
        %v997 = vrot.slane %v996, 1
        %v998 = vadd.f32 %v996, %v997
        %v999 = vsel %vm971, %v945, 0.0
        %v1000 = vsel %vm971, %v946, 0.0
        %v1001 = vadd.f32 %v999, %v1000
        %v1002 = vrot.slane %v1001, 4
        %v1003 = vadd.f32 %v1001, %v1002
        %v1004 = vrot.slane %v1003, 2
        %v1005 = vadd.f32 %v1003, %v1004
        %v1006 = vrot.slane %v1005, 1
        %v1007 = vadd.f32 %v1005, %v1006
        %v1008 = vsel %vm971, %v947, 0.0
        %v1009 = vsel %vm971, %v948, 0.0
        %v1010 = vadd.f32 %v1008, %v1009
        %v1011 = vrot.slane %v1010, 4
        %v1012 = vadd.f32 %v1010, %v1011
        %v1013 = vrot.slane %v1012, 2
        %v1014 = vadd.f32 %v1012, %v1013
        %v1015 = vrot.slane %v1014, 1
        %v1016 = vadd.f32 %v1014, %v1015
        %v1017 = vsel %vm971, %v949, 0.0
        %v1018 = vsel %vm971, %v950, 0.0
        %v1019 = vadd.f32 %v1017, %v1018
        %v1020 = vrot.slane %v1019, 4
        %v1021 = vadd.f32 %v1019, %v1020
        %v1022 = vrot.slane %v1021, 2
        %v1023 = vadd.f32 %v1021, %v1022
        %v1024 = vrot.slane %v1023, 1
        %v1025 = vadd.f32 %v1023, %v1024
        %v1026 = vsel %vm971, %v951, 0.0
        %v1027 = vsel %vm971, %v952, 0.0
        %v1028 = vadd.f32 %v1026, %v1027
        %v1029 = vrot.slane %v1028, 4
        %v1030 = vadd.f32 %v1028, %v1029
        %v1031 = vrot.slane %v1030, 2
        %v1032 = vadd.f32 %v1030, %v1031
        %v1033 = vrot.slane %v1032, 1
        %v1034 = vadd.f32 %v1032, %v1033
        %v1035 = vsel %vm971, %v953, 0.0
        %v1036 = vsel %vm971, %v954, 0.0
        %v1037 = vadd.f32 %v1035, %v1036
        %v1038 = vrot.slane %v1037, 4
        %v1039 = vadd.f32 %v1037, %v1038
        %v1040 = vrot.slane %v1039, 2
        %v1041 = vadd.f32 %v1039, %v1040
        %v1042 = vrot.slane %v1041, 1
        %v1043 = vadd.f32 %v1041, %v1042
        %v1044 = vsel %vm971, %v955, 0.0
        %v1045 = vsel %vm971, %v956, 0.0
        %v1046 = vadd.f32 %v1044, %v1045
        %v1047 = vrot.slane %v1046, 4
        %v1048 = vadd.f32 %v1046, %v1047
        %v1049 = vrot.slane %v1048, 2
        %v1050 = vadd.f32 %v1048, %v1049
        %v1051 = vrot.slane %v1050, 1
        %v1052 = vadd.f32 %v1050, %v1051
        %v1053 = vsel %vm971, %v957, 0.0
        %v1054 = vsel %vm971, %v958, 0.0
        %v1055 = vadd.f32 %v1053, %v1054
        %v1056 = vrot.slane %v1055, 4
        %v1057 = vadd.f32 %v1055, %v1056
        %v1058 = vrot.slane %v1057, 2
        %v1059 = vadd.f32 %v1057, %v1058
        %v1060 = vrot.slane %v1059, 1
        %v1061 = vadd.f32 %v1059, %v1060
        %v1062 = vsel %vm971, %v959, 0.0
        %v1063 = vsel %vm971, %v960, 0.0
        %v1064 = vadd.f32 %v1062, %v1063
        %v1065 = vrot.slane %v1064, 4
        %v1066 = vadd.f32 %v1064, %v1065
        %v1067 = vrot.slane %v1066, 2
        %v1068 = vadd.f32 %v1066, %v1067
        %v1069 = vrot.slane %v1068, 1
        %v1070 = vadd.f32 %v1068, %v1069
        %v1071 = vsel %vm971, %v961, 0.0
        %v1072 = vsel %vm971, %v962, 0.0
        %v1073 = vadd.f32 %v1071, %v1072
        %v1074 = vrot.slane %v1073, 4
        %v1075 = vadd.f32 %v1073, %v1074
        %v1076 = vrot.slane %v1075, 2
        %v1077 = vadd.f32 %v1075, %v1076
        %v1078 = vrot.slane %v1077, 1
        %v1079 = vadd.f32 %v1077, %v1078
        %v1080 = vsel %vm971, %v963, 0.0
        %v1081 = vsel %vm971, %v964, 0.0
        %v1082 = vadd.f32 %v1080, %v1081
        %v1083 = vrot.slane %v1082, 4
        %v1084 = vadd.f32 %v1082, %v1083
        %v1085 = vrot.slane %v1084, 2
        %v1086 = vadd.f32 %v1084, %v1085
        %v1087 = vrot.slane %v1086, 1
        %v1088 = vadd.f32 %v1086, %v1087
        %v1089 = vsel %vm971, %v965, 0.0
        %v1090 = vsel %vm971, %v966, 0.0
        %v1091 = vadd.f32 %v1089, %v1090
        %v1092 = vrot.slane %v1091, 4
        %v1093 = vadd.f32 %v1091, %v1092
        %v1094 = vrot.slane %v1093, 2
        %v1095 = vadd.f32 %v1093, %v1094
        %v1096 = vrot.slane %v1095, 1
        %v1097 = vadd.f32 %v1095, %v1096
        %v1098 = vsel %vm971, %v967, 0.0
        %v1099 = vsel %vm971, %v968, 0.0
        %v1100 = vadd.f32 %v1098, %v1099
        %v1101 = vrot.slane %v1100, 4
        %v1102 = vadd.f32 %v1100, %v1101
        %v1103 = vrot.slane %v1102, 2
        %v1104 = vadd.f32 %v1102, %v1103
        %v1105 = vrot.slane %v1104, 1
        %v1106 = vadd.f32 %v1104, %v1105
        %v1107 = vsel %vm971, %v969, 0.0
        %v1108 = vsel %vm971, %v970, 0.0
        %v1109 = vadd.f32 %v1107, %v1108
        %v1110 = vrot.slane %v1109, 4
        %v1111 = vadd.f32 %v1109, %v1110
        %v1112 = vrot.slane %v1111, 2
        %v1113 = vadd.f32 %v1111, %v1112
        %v1114 = vrot.slane %v1113, 1
        %v1115 = vadd.f32 %v1113, %v1114
        %vm1132 = vcmask 1041409
        %v1133 = vsel %vm1132, %v989, %v980
        %vm1134 = vcmask 1042434
        %v1135 = vsel %vm1134, %v998, %v1133
        %vm1136 = vcmask 1043459
        %v1137 = vsel %vm1136, %v1007, %v1135
        %vm1138 = vcmask 1044484
        %v1139 = vsel %vm1138, %v1016, %v1137
        %vm1140 = vcmask 1045509
        %v1141 = vsel %vm1140, %v1025, %v1139
        %vm1142 = vcmask 1046534
        %v1143 = vsel %vm1142, %v1034, %v1141
        %vm1144 = vcmask 1047559
        %v1145 = vsel %vm1144, %v1043, %v1143
        %v1146 = vsel %vm1132, %v1061, %v1052
        %v1147 = vsel %vm1134, %v1070, %v1146
        %v1148 = vsel %vm1136, %v1079, %v1147
        %v1149 = vsel %vm1138, %v1088, %v1148
        %v1150 = vsel %vm1140, %v1097, %v1149
        %v1151 = vsel %vm1142, %v1106, %v1150
        %v1152 = vsel %vm1144, %v1115, %v1151
        %v1155 = vadd.f32 %v777, %v1145
        %v1156 = vadd.f32 %v778, %v1152
        %1157 = vst.msk [vmem:[#allocation2] sm:$0xff] %vm971, %v1155
        %1158 = vst.msk [vmem:[#allocation2 + $0x8] sm:$0xff] %vm971, %v1156
        %v1159 = vld [vmem:[%s618] sm:$0xf]
        %v1160 = vld [vmem:[%s618 + $0x4] sm:$0xf]
        %v1161 = vld [vmem:[%s618 + $0x8] sm:$0xf]
        %v1162 = vld [vmem:[%s618 + $0xc] sm:$0xf]
        %v1163 = vld [vmem:[%s618 + $0x10] sm:$0xf]
        %v1164 = vld [vmem:[%s618 + $0x14] sm:$0xf]
        %v1165 = vld [vmem:[%s618 + $0x18] sm:$0xf]
        %v1166 = vld [vmem:[%s618 + $0x1c] sm:$0xf]
        %v1167 = vld [vmem:[%s618 + $0x20] sm:$0xf]
        %v1168 = vld [vmem:[%s618 + $0x24] sm:$0xf]
        %v1169 = vld [vmem:[%s618 + $0x28] sm:$0xf]
        %v1170 = vld [vmem:[%s618 + $0x2c] sm:$0xf]
        %v1171 = vld [vmem:[%s618 + $0x30] sm:$0xf]
        %v1172 = vld [vmem:[%s618 + $0x34] sm:$0xf]
        %v1173 = vld [vmem:[%s618 + $0x38] sm:$0xf]
        %v1174 = vld [vmem:[%s618 + $0x3c] sm:$0xf]
        %v1175 = vld [vmem:[%s618 + $0x40] sm:$0xf]
        %v1176 = vld [vmem:[%s618 + $0x44] sm:$0xf]
        %v1177 = vld [vmem:[%s618 + $0x48] sm:$0xf]
        %v1178 = vld [vmem:[%s618 + $0x4c] sm:$0xf]
        %v1179 = vld [vmem:[%s618 + $0x50] sm:$0xf]
        %v1180 = vld [vmem:[%s618 + $0x54] sm:$0xf]
        %v1181 = vld [vmem:[%s618 + $0x58] sm:$0xf]
        %v1182 = vld [vmem:[%s618 + $0x5c] sm:$0xf]
        %v1183 = vld [vmem:[%s618 + $0x60] sm:$0xf]
        %v1184 = vld [vmem:[%s618 + $0x64] sm:$0xf]
        %v1185 = vld [vmem:[%s618 + $0x68] sm:$0xf]
        %v1186 = vld [vmem:[%s618 + $0x6c] sm:$0xf]
        %v1187 = vld [vmem:[%s618 + $0x70] sm:$0xf]
        %v1188 = vld [vmem:[%s618 + $0x74] sm:$0xf]
        %v1189 = vld [vmem:[%s618 + $0x78] sm:$0xf]
        %v1190 = vld [vmem:[%s618 + $0x7c] sm:$0xf]
        %v1191 = vunpack.c.l.bf16 %v1159
        %v1192 = vunpack.c.l.bf16 %v1160
        %v1193 = vunpack.c.l.bf16 %v1161
        %v1194 = vunpack.c.l.bf16 %v1162
        %v1195 = vunpack.c.l.bf16 %v1163
        %v1196 = vunpack.c.l.bf16 %v1164
        %v1197 = vunpack.c.l.bf16 %v1165
        %v1198 = vunpack.c.l.bf16 %v1166
        %v1199 = vunpack.c.l.bf16 %v1167
        %v1200 = vunpack.c.l.bf16 %v1168
        %v1201 = vunpack.c.l.bf16 %v1169
        %v1202 = vunpack.c.l.bf16 %v1170
        %v1203 = vunpack.c.l.bf16 %v1171
        %v1204 = vunpack.c.l.bf16 %v1172
        %v1205 = vunpack.c.l.bf16 %v1173
        %v1206 = vunpack.c.l.bf16 %v1174
        %v1207 = vunpack.c.l.bf16 %v1175
        %v1208 = vunpack.c.l.bf16 %v1176
        %v1209 = vunpack.c.l.bf16 %v1177
        %v1210 = vunpack.c.l.bf16 %v1178
        %v1211 = vunpack.c.l.bf16 %v1179
        %v1212 = vunpack.c.l.bf16 %v1180
        %v1213 = vunpack.c.l.bf16 %v1181
        %v1214 = vunpack.c.l.bf16 %v1182
        %v1215 = vunpack.c.l.bf16 %v1183
        %v1216 = vunpack.c.l.bf16 %v1184
        %v1217 = vunpack.c.l.bf16 %v1185
        %v1218 = vunpack.c.l.bf16 %v1186
        %v1219 = vunpack.c.l.bf16 %v1187
        %v1220 = vunpack.c.l.bf16 %v1188
        %v1221 = vunpack.c.l.bf16 %v1189
        %v1222 = vunpack.c.l.bf16 %v1190
        %v1223 = vld [vmem:[%s625] sm:$0xff]
        %v1224 = vld [vmem:[%s625 + $0x8] sm:$0xff]
        %v1225 = vld [vmem:[%s625 + $0x10] sm:$0xff]
        %v1226 = vld [vmem:[%s625 + $0x18] sm:$0xff]
        %v1227 = vld [vmem:[%s625 + $0x20] sm:$0xff]
        %v1228 = vld [vmem:[%s625 + $0x28] sm:$0xff]
        %v1229 = vld [vmem:[%s625 + $0x30] sm:$0xff]
        %v1230 = vld [vmem:[%s625 + $0x38] sm:$0xff]
        %v1231 = vld [vmem:[%s625 + $0x40] sm:$0xff]
        %v1232 = vld [vmem:[%s625 + $0x48] sm:$0xff]
        %v1233 = vld [vmem:[%s625 + $0x50] sm:$0xff]
        %v1234 = vld [vmem:[%s625 + $0x58] sm:$0xff]
        %v1235 = vld [vmem:[%s625 + $0x60] sm:$0xff]
        %v1236 = vld [vmem:[%s625 + $0x68] sm:$0xff]
        %v1237 = vld [vmem:[%s625 + $0x70] sm:$0xff]
        %v1238 = vld [vmem:[%s625 + $0x78] sm:$0xff]
        %v1239 = vld [vmem:[%s625 + $0x80] sm:$0xff]
        %v1240 = vld [vmem:[%s625 + $0x88] sm:$0xff]
        %v1241 = vld [vmem:[%s625 + $0x90] sm:$0xff]
        %v1242 = vld [vmem:[%s625 + $0x98] sm:$0xff]
        %v1243 = vld [vmem:[%s625 + $0xa0] sm:$0xff]
        %v1244 = vld [vmem:[%s625 + $0xa8] sm:$0xff]
        %v1245 = vld [vmem:[%s625 + $0xb0] sm:$0xff]
        %v1246 = vld [vmem:[%s625 + $0xb8] sm:$0xff]
        %v1247 = vld [vmem:[%s625 + $0xc0] sm:$0xff]
        %v1248 = vld [vmem:[%s625 + $0xc8] sm:$0xff]
        %v1249 = vld [vmem:[%s625 + $0xd0] sm:$0xff]
        %v1250 = vld [vmem:[%s625 + $0xd8] sm:$0xff]
        %v1251 = vld [vmem:[%s625 + $0xe0] sm:$0xff]
        %v1252 = vld [vmem:[%s625 + $0xe8] sm:$0xff]
        %v1253 = vld [vmem:[%s625 + $0xf0] sm:$0xff]
        %v1254 = vld [vmem:[%s625 + $0xf8] sm:$0xff]
        %v1255 = vld [vmem:[#allocation2] sm:$0xff]
        %v1256 = vld [vmem:[#allocation2 + $0x8] sm:$0xff]
        %1258 = vset.pattern.permute.xlu0 1
        %1259 = vperm.xlu0 %1258, %v1223
        %v1260 = vpop.permute.xlu0 %1259
        %1263 = vset.pattern.permute.xlu0 1
        %1264 = vperm.xlu0 %1263, %v1224
        %v1265 = vpop.permute.xlu0 %1264
        %1268 = vset.pattern.permute.xlu0 1
        %1269 = vperm.xlu0 %1268, %v1225
        %v1270 = vpop.permute.xlu0 %1269
        %1273 = vset.pattern.permute.xlu0 1
        %1274 = vperm.xlu0 %1273, %v1226
        %v1275 = vpop.permute.xlu0 %1274
        %1278 = vset.pattern.permute.xlu0 1
        %1279 = vperm.xlu0 %1278, %v1227
        %v1280 = vpop.permute.xlu0 %1279
        %1283 = vset.pattern.permute.xlu0 1
        %1284 = vperm.xlu0 %1283, %v1228
        %v1285 = vpop.permute.xlu0 %1284
        %1288 = vset.pattern.permute.xlu0 1
        %1289 = vperm.xlu0 %1288, %v1229
        %v1290 = vpop.permute.xlu0 %1289
        %1293 = vset.pattern.permute.xlu0 1
        %1294 = vperm.xlu0 %1293, %v1230
        %v1295 = vpop.permute.xlu0 %1294
        %1298 = vset.pattern.permute.xlu0 1
        %1299 = vperm.xlu0 %1298, %v1231
        %v1300 = vpop.permute.xlu0 %1299
        %1303 = vset.pattern.permute.xlu0 1
        %1304 = vperm.xlu0 %1303, %v1232
        %v1305 = vpop.permute.xlu0 %1304
        %1308 = vset.pattern.permute.xlu0 1
        %1309 = vperm.xlu0 %1308, %v1233
        %v1310 = vpop.permute.xlu0 %1309
        %1313 = vset.pattern.permute.xlu0 1
        %1314 = vperm.xlu0 %1313, %v1234
        %v1315 = vpop.permute.xlu0 %1314
        %1318 = vset.pattern.permute.xlu0 1
        %1319 = vperm.xlu0 %1318, %v1235
        %v1320 = vpop.permute.xlu0 %1319
        %1323 = vset.pattern.permute.xlu0 1
        %1324 = vperm.xlu0 %1323, %v1236
        %v1325 = vpop.permute.xlu0 %1324
        %1328 = vset.pattern.permute.xlu0 1
        %1329 = vperm.xlu0 %1328, %v1237
        %v1330 = vpop.permute.xlu0 %1329
        %1333 = vset.pattern.permute.xlu0 1
        %1334 = vperm.xlu0 %1333, %v1238
        %v1335 = vpop.permute.xlu0 %1334
        %1338 = vset.pattern.permute.xlu0 1
        %1339 = vperm.xlu0 %1338, %v1239
        %v1340 = vpop.permute.xlu0 %1339
        %1343 = vset.pattern.permute.xlu0 1
        %1344 = vperm.xlu0 %1343, %v1240
        %v1345 = vpop.permute.xlu0 %1344
        %1348 = vset.pattern.permute.xlu0 1
        %1349 = vperm.xlu0 %1348, %v1241
        %v1350 = vpop.permute.xlu0 %1349
        %1353 = vset.pattern.permute.xlu0 1
        %1354 = vperm.xlu0 %1353, %v1242
        %v1355 = vpop.permute.xlu0 %1354
        %1358 = vset.pattern.permute.xlu0 1
        %1359 = vperm.xlu0 %1358, %v1243
        %v1360 = vpop.permute.xlu0 %1359
        %1363 = vset.pattern.permute.xlu0 1
        %1364 = vperm.xlu0 %1363, %v1244
        %v1365 = vpop.permute.xlu0 %1364
        %1368 = vset.pattern.permute.xlu0 1
        %1369 = vperm.xlu0 %1368, %v1245
        %v1370 = vpop.permute.xlu0 %1369
        %1373 = vset.pattern.permute.xlu0 1
        %1374 = vperm.xlu0 %1373, %v1246
        %v1375 = vpop.permute.xlu0 %1374
        %1378 = vset.pattern.permute.xlu0 1
        %1379 = vperm.xlu0 %1378, %v1247
        %v1380 = vpop.permute.xlu0 %1379
        %1383 = vset.pattern.permute.xlu0 1
        %1384 = vperm.xlu0 %1383, %v1248
        %v1385 = vpop.permute.xlu0 %1384
        %1388 = vset.pattern.permute.xlu0 1
        %1389 = vperm.xlu0 %1388, %v1249
        %v1390 = vpop.permute.xlu0 %1389
        %1393 = vset.pattern.permute.xlu0 1
        %1394 = vperm.xlu0 %1393, %v1250
        %v1395 = vpop.permute.xlu0 %1394
        %1398 = vset.pattern.permute.xlu0 1
        %1399 = vperm.xlu0 %1398, %v1251
        %v1400 = vpop.permute.xlu0 %1399
        %1403 = vset.pattern.permute.xlu0 1
        %1404 = vperm.xlu0 %1403, %v1252
        %v1405 = vpop.permute.xlu0 %1404
        %1408 = vset.pattern.permute.xlu0 1
        %1409 = vperm.xlu0 %1408, %v1253
        %v1410 = vpop.permute.xlu0 %1409
        %1413 = vset.pattern.permute.xlu0 1
        %1414 = vperm.xlu0 %1413, %v1254
        %v1415 = vpop.permute.xlu0 %1414
        %v1417 = vmul.f32 %v1191, %v1260
        %v1418 = vmul.f32 %v1192, %v1265
        %v1419 = vmul.f32 %v1193, %v1270
        %v1420 = vmul.f32 %v1194, %v1275
        %v1421 = vmul.f32 %v1195, %v1280
        %v1422 = vmul.f32 %v1196, %v1285
        %v1423 = vmul.f32 %v1197, %v1290
        %v1424 = vmul.f32 %v1198, %v1295
        %v1425 = vmul.f32 %v1199, %v1300
        %v1426 = vmul.f32 %v1200, %v1305
        %v1427 = vmul.f32 %v1201, %v1310
        %v1428 = vmul.f32 %v1202, %v1315
        %v1429 = vmul.f32 %v1203, %v1320
        %v1430 = vmul.f32 %v1204, %v1325
        %v1431 = vmul.f32 %v1205, %v1330
        %v1432 = vmul.f32 %v1206, %v1335
        %v1433 = vmul.f32 %v1207, %v1340
        %v1434 = vmul.f32 %v1208, %v1345
        %v1435 = vmul.f32 %v1209, %v1350
        %v1436 = vmul.f32 %v1210, %v1355
        %v1437 = vmul.f32 %v1211, %v1360
        %v1438 = vmul.f32 %v1212, %v1365
        %v1439 = vmul.f32 %v1213, %v1370
        %v1440 = vmul.f32 %v1214, %v1375
        %v1441 = vmul.f32 %v1215, %v1380
        %v1442 = vmul.f32 %v1216, %v1385
        %v1443 = vmul.f32 %v1217, %v1390
        %v1444 = vmul.f32 %v1218, %v1395
        %v1445 = vmul.f32 %v1219, %v1400
        %v1446 = vmul.f32 %v1220, %v1405
        %v1447 = vmul.f32 %v1221, %v1410
        %v1448 = vmul.f32 %v1222, %v1415
        %vm1449 = vcmask 523520
        %v1450 = vsel %vm1449, %v1417, 0.0
        %v1451 = vsel %vm1449, %v1418, 0.0
        %v1452 = vadd.f32 %v1450, %v1451
        %v1453 = vrot.slane %v1452, 4
        %v1454 = vadd.f32 %v1452, %v1453
        %v1455 = vrot.slane %v1454, 2
        %v1456 = vadd.f32 %v1454, %v1455
        %v1457 = vrot.slane %v1456, 1
        %v1458 = vadd.f32 %v1456, %v1457
        %v1459 = vsel %vm1449, %v1419, 0.0
        %v1460 = vsel %vm1449, %v1420, 0.0
        %v1461 = vadd.f32 %v1459, %v1460
        %v1462 = vrot.slane %v1461, 4
        %v1463 = vadd.f32 %v1461, %v1462
        %v1464 = vrot.slane %v1463, 2
        %v1465 = vadd.f32 %v1463, %v1464
        %v1466 = vrot.slane %v1465, 1
        %v1467 = vadd.f32 %v1465, %v1466
        %v1468 = vsel %vm1449, %v1421, 0.0
        %v1469 = vsel %vm1449, %v1422, 0.0
        %v1470 = vadd.f32 %v1468, %v1469
        %v1471 = vrot.slane %v1470, 4
        %v1472 = vadd.f32 %v1470, %v1471
        %v1473 = vrot.slane %v1472, 2
        %v1474 = vadd.f32 %v1472, %v1473
        %v1475 = vrot.slane %v1474, 1
        %v1476 = vadd.f32 %v1474, %v1475
        %v1477 = vsel %vm1449, %v1423, 0.0
        %v1478 = vsel %vm1449, %v1424, 0.0
        %v1479 = vadd.f32 %v1477, %v1478
        %v1480 = vrot.slane %v1479, 4
        %v1481 = vadd.f32 %v1479, %v1480
        %v1482 = vrot.slane %v1481, 2
        %v1483 = vadd.f32 %v1481, %v1482
        %v1484 = vrot.slane %v1483, 1
        %v1485 = vadd.f32 %v1483, %v1484
        %v1486 = vsel %vm1449, %v1425, 0.0
        %v1487 = vsel %vm1449, %v1426, 0.0
        %v1488 = vadd.f32 %v1486, %v1487
        %v1489 = vrot.slane %v1488, 4
        %v1490 = vadd.f32 %v1488, %v1489
        %v1491 = vrot.slane %v1490, 2
        %v1492 = vadd.f32 %v1490, %v1491
        %v1493 = vrot.slane %v1492, 1
        %v1494 = vadd.f32 %v1492, %v1493
        %v1495 = vsel %vm1449, %v1427, 0.0
        %v1496 = vsel %vm1449, %v1428, 0.0
        %v1497 = vadd.f32 %v1495, %v1496
        %v1498 = vrot.slane %v1497, 4
        %v1499 = vadd.f32 %v1497, %v1498
        %v1500 = vrot.slane %v1499, 2
        %v1501 = vadd.f32 %v1499, %v1500
        %v1502 = vrot.slane %v1501, 1
        %v1503 = vadd.f32 %v1501, %v1502
        %v1504 = vsel %vm1449, %v1429, 0.0
        %v1505 = vsel %vm1449, %v1430, 0.0
        %v1506 = vadd.f32 %v1504, %v1505
        %v1507 = vrot.slane %v1506, 4
        %v1508 = vadd.f32 %v1506, %v1507
        %v1509 = vrot.slane %v1508, 2
        %v1510 = vadd.f32 %v1508, %v1509
        %v1511 = vrot.slane %v1510, 1
        %v1512 = vadd.f32 %v1510, %v1511
        %v1513 = vsel %vm1449, %v1431, 0.0
        %v1514 = vsel %vm1449, %v1432, 0.0
        %v1515 = vadd.f32 %v1513, %v1514
        %v1516 = vrot.slane %v1515, 4
        %v1517 = vadd.f32 %v1515, %v1516
        %v1518 = vrot.slane %v1517, 2
        %v1519 = vadd.f32 %v1517, %v1518
        %v1520 = vrot.slane %v1519, 1
        %v1521 = vadd.f32 %v1519, %v1520
        %v1522 = vsel %vm1449, %v1433, 0.0
        %v1523 = vsel %vm1449, %v1434, 0.0
        %v1524 = vadd.f32 %v1522, %v1523
        %v1525 = vrot.slane %v1524, 4
        %v1526 = vadd.f32 %v1524, %v1525
        %v1527 = vrot.slane %v1526, 2
        %v1528 = vadd.f32 %v1526, %v1527
        %v1529 = vrot.slane %v1528, 1
        %v1530 = vadd.f32 %v1528, %v1529
        %v1531 = vsel %vm1449, %v1435, 0.0
        %v1532 = vsel %vm1449, %v1436, 0.0
        %v1533 = vadd.f32 %v1531, %v1532
        %v1534 = vrot.slane %v1533, 4
        %v1535 = vadd.f32 %v1533, %v1534
        %v1536 = vrot.slane %v1535, 2
        %v1537 = vadd.f32 %v1535, %v1536
        %v1538 = vrot.slane %v1537, 1
        %v1539 = vadd.f32 %v1537, %v1538
        %v1540 = vsel %vm1449, %v1437, 0.0
        %v1541 = vsel %vm1449, %v1438, 0.0
        %v1542 = vadd.f32 %v1540, %v1541
        %v1543 = vrot.slane %v1542, 4
        %v1544 = vadd.f32 %v1542, %v1543
        %v1545 = vrot.slane %v1544, 2
        %v1546 = vadd.f32 %v1544, %v1545
        %v1547 = vrot.slane %v1546, 1
        %v1548 = vadd.f32 %v1546, %v1547
        %v1549 = vsel %vm1449, %v1439, 0.0
        %v1550 = vsel %vm1449, %v1440, 0.0
        %v1551 = vadd.f32 %v1549, %v1550
        %v1552 = vrot.slane %v1551, 4
        %v1553 = vadd.f32 %v1551, %v1552
        %v1554 = vrot.slane %v1553, 2
        %v1555 = vadd.f32 %v1553, %v1554
        %v1556 = vrot.slane %v1555, 1
        %v1557 = vadd.f32 %v1555, %v1556
        %v1558 = vsel %vm1449, %v1441, 0.0
        %v1559 = vsel %vm1449, %v1442, 0.0
        %v1560 = vadd.f32 %v1558, %v1559
        %v1561 = vrot.slane %v1560, 4
        %v1562 = vadd.f32 %v1560, %v1561
        %v1563 = vrot.slane %v1562, 2
        %v1564 = vadd.f32 %v1562, %v1563
        %v1565 = vrot.slane %v1564, 1
        %v1566 = vadd.f32 %v1564, %v1565
        %v1567 = vsel %vm1449, %v1443, 0.0
        %v1568 = vsel %vm1449, %v1444, 0.0
        %v1569 = vadd.f32 %v1567, %v1568
        %v1570 = vrot.slane %v1569, 4
        %v1571 = vadd.f32 %v1569, %v1570
        %v1572 = vrot.slane %v1571, 2
        %v1573 = vadd.f32 %v1571, %v1572
        %v1574 = vrot.slane %v1573, 1
        %v1575 = vadd.f32 %v1573, %v1574
        %v1576 = vsel %vm1449, %v1445, 0.0
        %v1577 = vsel %vm1449, %v1446, 0.0
        %v1578 = vadd.f32 %v1576, %v1577
        %v1579 = vrot.slane %v1578, 4
        %v1580 = vadd.f32 %v1578, %v1579
        %v1581 = vrot.slane %v1580, 2
        %v1582 = vadd.f32 %v1580, %v1581
        %v1583 = vrot.slane %v1582, 1
        %v1584 = vadd.f32 %v1582, %v1583
        %v1585 = vsel %vm1449, %v1447, 0.0
        %v1586 = vsel %vm1449, %v1448, 0.0
        %v1587 = vadd.f32 %v1585, %v1586
        %v1588 = vrot.slane %v1587, 4
        %v1589 = vadd.f32 %v1587, %v1588
        %v1590 = vrot.slane %v1589, 2
        %v1591 = vadd.f32 %v1589, %v1590
        %v1592 = vrot.slane %v1591, 1
        %v1593 = vadd.f32 %v1591, %v1592
        %v1610 = vsel %vm1132, %v1467, %v1458
        %v1611 = vsel %vm1134, %v1476, %v1610
        %v1612 = vsel %vm1136, %v1485, %v1611
        %v1613 = vsel %vm1138, %v1494, %v1612
        %v1614 = vsel %vm1140, %v1503, %v1613
        %v1615 = vsel %vm1142, %v1512, %v1614
        %v1616 = vsel %vm1144, %v1521, %v1615
        %v1617 = vsel %vm1132, %v1539, %v1530
        %v1618 = vsel %vm1134, %v1548, %v1617
        %v1619 = vsel %vm1136, %v1557, %v1618
        %v1620 = vsel %vm1138, %v1566, %v1619
        %v1621 = vsel %vm1140, %v1575, %v1620
        %v1622 = vsel %vm1142, %v1584, %v1621
        %v1623 = vsel %vm1144, %v1593, %v1622
        %v1626 = vadd.f32 %v1255, %v1616
        %v1627 = vadd.f32 %v1256, %v1623
        %1628 = vst.msk [vmem:[#allocation2] sm:$0xff] %vm1449, %v1626
        %1629 = vst.msk [vmem:[#allocation2 + $0x8] sm:$0xff] %vm1449, %v1627
        %v1630 = vld [vmem:[%s618] sm:$0xf]
        %v1631 = vld [vmem:[%s618 + $0x4] sm:$0xf]
        %v1632 = vld [vmem:[%s618 + $0x8] sm:$0xf]
        %v1633 = vld [vmem:[%s618 + $0xc] sm:$0xf]
        %v1634 = vld [vmem:[%s618 + $0x10] sm:$0xf]
        %v1635 = vld [vmem:[%s618 + $0x14] sm:$0xf]
        %v1636 = vld [vmem:[%s618 + $0x18] sm:$0xf]
        %v1637 = vld [vmem:[%s618 + $0x1c] sm:$0xf]
        %v1638 = vld [vmem:[%s618 + $0x20] sm:$0xf]
        %v1639 = vld [vmem:[%s618 + $0x24] sm:$0xf]
        %v1640 = vld [vmem:[%s618 + $0x28] sm:$0xf]
        %v1641 = vld [vmem:[%s618 + $0x2c] sm:$0xf]
        %v1642 = vld [vmem:[%s618 + $0x30] sm:$0xf]
        %v1643 = vld [vmem:[%s618 + $0x34] sm:$0xf]
        %v1644 = vld [vmem:[%s618 + $0x38] sm:$0xf]
        %v1645 = vld [vmem:[%s618 + $0x3c] sm:$0xf]
        %v1646 = vld [vmem:[%s618 + $0x40] sm:$0xf]
        %v1647 = vld [vmem:[%s618 + $0x44] sm:$0xf]
        %v1648 = vld [vmem:[%s618 + $0x48] sm:$0xf]
        %v1649 = vld [vmem:[%s618 + $0x4c] sm:$0xf]
        %v1650 = vld [vmem:[%s618 + $0x50] sm:$0xf]
        %v1651 = vld [vmem:[%s618 + $0x54] sm:$0xf]
        %v1652 = vld [vmem:[%s618 + $0x58] sm:$0xf]
        %v1653 = vld [vmem:[%s618 + $0x5c] sm:$0xf]
        %v1654 = vld [vmem:[%s618 + $0x60] sm:$0xf]
        %v1655 = vld [vmem:[%s618 + $0x64] sm:$0xf]
        %v1656 = vld [vmem:[%s618 + $0x68] sm:$0xf]
        %v1657 = vld [vmem:[%s618 + $0x6c] sm:$0xf]
        %v1658 = vld [vmem:[%s618 + $0x70] sm:$0xf]
        %v1659 = vld [vmem:[%s618 + $0x74] sm:$0xf]
        %v1660 = vld [vmem:[%s618 + $0x78] sm:$0xf]
        %v1661 = vld [vmem:[%s618 + $0x7c] sm:$0xf]
        %v1662 = vunpack.c.l.bf16 %v1630
        %v1663 = vunpack.c.l.bf16 %v1631
        %v1664 = vunpack.c.l.bf16 %v1632
        %v1665 = vunpack.c.l.bf16 %v1633
        %v1666 = vunpack.c.l.bf16 %v1634
        %v1667 = vunpack.c.l.bf16 %v1635
        %v1668 = vunpack.c.l.bf16 %v1636
        %v1669 = vunpack.c.l.bf16 %v1637
        %v1670 = vunpack.c.l.bf16 %v1638
        %v1671 = vunpack.c.l.bf16 %v1639
        %v1672 = vunpack.c.l.bf16 %v1640
        %v1673 = vunpack.c.l.bf16 %v1641
        %v1674 = vunpack.c.l.bf16 %v1642
        %v1675 = vunpack.c.l.bf16 %v1643
        %v1676 = vunpack.c.l.bf16 %v1644
        %v1677 = vunpack.c.l.bf16 %v1645
        %v1678 = vunpack.c.l.bf16 %v1646
        %v1679 = vunpack.c.l.bf16 %v1647
        %v1680 = vunpack.c.l.bf16 %v1648
        %v1681 = vunpack.c.l.bf16 %v1649
        %v1682 = vunpack.c.l.bf16 %v1650
        %v1683 = vunpack.c.l.bf16 %v1651
        %v1684 = vunpack.c.l.bf16 %v1652
        %v1685 = vunpack.c.l.bf16 %v1653
        %v1686 = vunpack.c.l.bf16 %v1654
        %v1687 = vunpack.c.l.bf16 %v1655
        %v1688 = vunpack.c.l.bf16 %v1656
        %v1689 = vunpack.c.l.bf16 %v1657
        %v1690 = vunpack.c.l.bf16 %v1658
        %v1691 = vunpack.c.l.bf16 %v1659
        %v1692 = vunpack.c.l.bf16 %v1660
        %v1693 = vunpack.c.l.bf16 %v1661
        %v1694 = vld [vmem:[%s625] sm:$0xff]
        %v1695 = vld [vmem:[%s625 + $0x8] sm:$0xff]
        %v1696 = vld [vmem:[%s625 + $0x10] sm:$0xff]
        %v1697 = vld [vmem:[%s625 + $0x18] sm:$0xff]
        %v1698 = vld [vmem:[%s625 + $0x20] sm:$0xff]
        %v1699 = vld [vmem:[%s625 + $0x28] sm:$0xff]
        %v1700 = vld [vmem:[%s625 + $0x30] sm:$0xff]
        %v1701 = vld [vmem:[%s625 + $0x38] sm:$0xff]
        %v1702 = vld [vmem:[%s625 + $0x40] sm:$0xff]
        %v1703 = vld [vmem:[%s625 + $0x48] sm:$0xff]
        %v1704 = vld [vmem:[%s625 + $0x50] sm:$0xff]
        %v1705 = vld [vmem:[%s625 + $0x58] sm:$0xff]
        %v1706 = vld [vmem:[%s625 + $0x60] sm:$0xff]
        %v1707 = vld [vmem:[%s625 + $0x68] sm:$0xff]
        %v1708 = vld [vmem:[%s625 + $0x70] sm:$0xff]
        %v1709 = vld [vmem:[%s625 + $0x78] sm:$0xff]
        %v1710 = vld [vmem:[%s625 + $0x80] sm:$0xff]
        %v1711 = vld [vmem:[%s625 + $0x88] sm:$0xff]
        %v1712 = vld [vmem:[%s625 + $0x90] sm:$0xff]
        %v1713 = vld [vmem:[%s625 + $0x98] sm:$0xff]
        %v1714 = vld [vmem:[%s625 + $0xa0] sm:$0xff]
        %v1715 = vld [vmem:[%s625 + $0xa8] sm:$0xff]
        %v1716 = vld [vmem:[%s625 + $0xb0] sm:$0xff]
        %v1717 = vld [vmem:[%s625 + $0xb8] sm:$0xff]
        %v1718 = vld [vmem:[%s625 + $0xc0] sm:$0xff]
        %v1719 = vld [vmem:[%s625 + $0xc8] sm:$0xff]
        %v1720 = vld [vmem:[%s625 + $0xd0] sm:$0xff]
        %v1721 = vld [vmem:[%s625 + $0xd8] sm:$0xff]
        %v1722 = vld [vmem:[%s625 + $0xe0] sm:$0xff]
        %v1723 = vld [vmem:[%s625 + $0xe8] sm:$0xff]
        %v1724 = vld [vmem:[%s625 + $0xf0] sm:$0xff]
        %v1725 = vld [vmem:[%s625 + $0xf8] sm:$0xff]
        %v1726 = vld [vmem:[#allocation2] sm:$0xff]
        %v1727 = vld [vmem:[#allocation2 + $0x8] sm:$0xff]
        %1729 = vset.pattern.permute.xlu0 2
        %1730 = vperm.xlu0 %1729, %v1694
        %v1731 = vpop.permute.xlu0 %1730
        %1734 = vset.pattern.permute.xlu0 2
        %1735 = vperm.xlu0 %1734, %v1695
        %v1736 = vpop.permute.xlu0 %1735
        %1739 = vset.pattern.permute.xlu0 2
        %1740 = vperm.xlu0 %1739, %v1696
        %v1741 = vpop.permute.xlu0 %1740
        %1744 = vset.pattern.permute.xlu0 2
        %1745 = vperm.xlu0 %1744, %v1697
        %v1746 = vpop.permute.xlu0 %1745
        %1749 = vset.pattern.permute.xlu0 2
        %1750 = vperm.xlu0 %1749, %v1698
        %v1751 = vpop.permute.xlu0 %1750
        %1754 = vset.pattern.permute.xlu0 2
        %1755 = vperm.xlu0 %1754, %v1699
        %v1756 = vpop.permute.xlu0 %1755
        %1759 = vset.pattern.permute.xlu0 2
        %1760 = vperm.xlu0 %1759, %v1700
        %v1761 = vpop.permute.xlu0 %1760
        %1764 = vset.pattern.permute.xlu0 2
        %1765 = vperm.xlu0 %1764, %v1701
        %v1766 = vpop.permute.xlu0 %1765
        %1769 = vset.pattern.permute.xlu0 2
        %1770 = vperm.xlu0 %1769, %v1702
        %v1771 = vpop.permute.xlu0 %1770
        %1774 = vset.pattern.permute.xlu0 2
        %1775 = vperm.xlu0 %1774, %v1703
        %v1776 = vpop.permute.xlu0 %1775
        %1779 = vset.pattern.permute.xlu0 2
        %1780 = vperm.xlu0 %1779, %v1704
        %v1781 = vpop.permute.xlu0 %1780
        %1784 = vset.pattern.permute.xlu0 2
        %1785 = vperm.xlu0 %1784, %v1705
        %v1786 = vpop.permute.xlu0 %1785
        %1789 = vset.pattern.permute.xlu0 2
        %1790 = vperm.xlu0 %1789, %v1706
        %v1791 = vpop.permute.xlu0 %1790
        %1794 = vset.pattern.permute.xlu0 2
        %1795 = vperm.xlu0 %1794, %v1707
        %v1796 = vpop.permute.xlu0 %1795
        %1799 = vset.pattern.permute.xlu0 2
        %1800 = vperm.xlu0 %1799, %v1708
        %v1801 = vpop.permute.xlu0 %1800
        %1804 = vset.pattern.permute.xlu0 2
        %1805 = vperm.xlu0 %1804, %v1709
        %v1806 = vpop.permute.xlu0 %1805
        %1809 = vset.pattern.permute.xlu0 2
        %1810 = vperm.xlu0 %1809, %v1710
        %v1811 = vpop.permute.xlu0 %1810
        %1814 = vset.pattern.permute.xlu0 2
        %1815 = vperm.xlu0 %1814, %v1711
        %v1816 = vpop.permute.xlu0 %1815
        %1819 = vset.pattern.permute.xlu0 2
        %1820 = vperm.xlu0 %1819, %v1712
        %v1821 = vpop.permute.xlu0 %1820
        %1824 = vset.pattern.permute.xlu0 2
        %1825 = vperm.xlu0 %1824, %v1713
        %v1826 = vpop.permute.xlu0 %1825
        %1829 = vset.pattern.permute.xlu0 2
        %1830 = vperm.xlu0 %1829, %v1714
        %v1831 = vpop.permute.xlu0 %1830
        %1834 = vset.pattern.permute.xlu0 2
        %1835 = vperm.xlu0 %1834, %v1715
        %v1836 = vpop.permute.xlu0 %1835
        %1839 = vset.pattern.permute.xlu0 2
        %1840 = vperm.xlu0 %1839, %v1716
        %v1841 = vpop.permute.xlu0 %1840
        %1844 = vset.pattern.permute.xlu0 2
        %1845 = vperm.xlu0 %1844, %v1717
        %v1846 = vpop.permute.xlu0 %1845
        %1849 = vset.pattern.permute.xlu0 2
        %1850 = vperm.xlu0 %1849, %v1718
        %v1851 = vpop.permute.xlu0 %1850
        %1854 = vset.pattern.permute.xlu0 2
        %1855 = vperm.xlu0 %1854, %v1719
        %v1856 = vpop.permute.xlu0 %1855
        %1859 = vset.pattern.permute.xlu0 2
        %1860 = vperm.xlu0 %1859, %v1720
        %v1861 = vpop.permute.xlu0 %1860
        %1864 = vset.pattern.permute.xlu0 2
        %1865 = vperm.xlu0 %1864, %v1721
        %v1866 = vpop.permute.xlu0 %1865
        %1869 = vset.pattern.permute.xlu0 2
        %1870 = vperm.xlu0 %1869, %v1722
        %v1871 = vpop.permute.xlu0 %1870
        %1874 = vset.pattern.permute.xlu0 2
        %1875 = vperm.xlu0 %1874, %v1723
        %v1876 = vpop.permute.xlu0 %1875
        %1879 = vset.pattern.permute.xlu0 2
        %1880 = vperm.xlu0 %1879, %v1724
        %v1881 = vpop.permute.xlu0 %1880
        %1884 = vset.pattern.permute.xlu0 2
        %1885 = vperm.xlu0 %1884, %v1725
        %v1886 = vpop.permute.xlu0 %1885
        %v1888 = vmul.f32 %v1662, %v1731
        %v1889 = vmul.f32 %v1663, %v1736
        %v1890 = vmul.f32 %v1664, %v1741
        %v1891 = vmul.f32 %v1665, %v1746
        %v1892 = vmul.f32 %v1666, %v1751
        %v1893 = vmul.f32 %v1667, %v1756
        %v1894 = vmul.f32 %v1668, %v1761
        %v1895 = vmul.f32 %v1669, %v1766
        %v1896 = vmul.f32 %v1670, %v1771
        %v1897 = vmul.f32 %v1671, %v1776
        %v1898 = vmul.f32 %v1672, %v1781
        %v1899 = vmul.f32 %v1673, %v1786
        %v1900 = vmul.f32 %v1674, %v1791
        %v1901 = vmul.f32 %v1675, %v1796
        %v1902 = vmul.f32 %v1676, %v1801
        %v1903 = vmul.f32 %v1677, %v1806
        %v1904 = vmul.f32 %v1678, %v1811
        %v1905 = vmul.f32 %v1679, %v1816
        %v1906 = vmul.f32 %v1680, %v1821
        %v1907 = vmul.f32 %v1681, %v1826
        %v1908 = vmul.f32 %v1682, %v1831
        %v1909 = vmul.f32 %v1683, %v1836
        %v1910 = vmul.f32 %v1684, %v1841
        %v1911 = vmul.f32 %v1685, %v1846
        %v1912 = vmul.f32 %v1686, %v1851
        %v1913 = vmul.f32 %v1687, %v1856
        %v1914 = vmul.f32 %v1688, %v1861
        %v1915 = vmul.f32 %v1689, %v1866
        %v1916 = vmul.f32 %v1690, %v1871
        %v1917 = vmul.f32 %v1691, %v1876
        %v1918 = vmul.f32 %v1692, %v1881
        %v1919 = vmul.f32 %v1693, %v1886
        %vm1920 = vcmask 785920
        %v1921 = vsel %vm1920, %v1888, 0.0
        %v1922 = vsel %vm1920, %v1889, 0.0
        %v1923 = vadd.f32 %v1921, %v1922
        %v1924 = vrot.slane %v1923, 4
        %v1925 = vadd.f32 %v1923, %v1924
        %v1926 = vrot.slane %v1925, 2
        %v1927 = vadd.f32 %v1925, %v1926
        %v1928 = vrot.slane %v1927, 1
        %v1929 = vadd.f32 %v1927, %v1928
        %v1930 = vsel %vm1920, %v1890, 0.0
        %v1931 = vsel %vm1920, %v1891, 0.0
        %v1932 = vadd.f32 %v1930, %v1931
        %v1933 = vrot.slane %v1932, 4
        %v1934 = vadd.f32 %v1932, %v1933
        %v1935 = vrot.slane %v1934, 2
        %v1936 = vadd.f32 %v1934, %v1935
        %v1937 = vrot.slane %v1936, 1
        %v1938 = vadd.f32 %v1936, %v1937
        %v1939 = vsel %vm1920, %v1892, 0.0
        %v1940 = vsel %vm1920, %v1893, 0.0
        %v1941 = vadd.f32 %v1939, %v1940
        %v1942 = vrot.slane %v1941, 4
        %v1943 = vadd.f32 %v1941, %v1942
        %v1944 = vrot.slane %v1943, 2
        %v1945 = vadd.f32 %v1943, %v1944
        %v1946 = vrot.slane %v1945, 1
        %v1947 = vadd.f32 %v1945, %v1946
        %v1948 = vsel %vm1920, %v1894, 0.0
        %v1949 = vsel %vm1920, %v1895, 0.0
        %v1950 = vadd.f32 %v1948, %v1949
        %v1951 = vrot.slane %v1950, 4
        %v1952 = vadd.f32 %v1950, %v1951
        %v1953 = vrot.slane %v1952, 2
        %v1954 = vadd.f32 %v1952, %v1953
        %v1955 = vrot.slane %v1954, 1
        %v1956 = vadd.f32 %v1954, %v1955
        %v1957 = vsel %vm1920, %v1896, 0.0
        %v1958 = vsel %vm1920, %v1897, 0.0
        %v1959 = vadd.f32 %v1957, %v1958
        %v1960 = vrot.slane %v1959, 4
        %v1961 = vadd.f32 %v1959, %v1960
        %v1962 = vrot.slane %v1961, 2
        %v1963 = vadd.f32 %v1961, %v1962
        %v1964 = vrot.slane %v1963, 1
        %v1965 = vadd.f32 %v1963, %v1964
        %v1966 = vsel %vm1920, %v1898, 0.0
        %v1967 = vsel %vm1920, %v1899, 0.0
        %v1968 = vadd.f32 %v1966, %v1967
        %v1969 = vrot.slane %v1968, 4
        %v1970 = vadd.f32 %v1968, %v1969
        %v1971 = vrot.slane %v1970, 2
        %v1972 = vadd.f32 %v1970, %v1971
        %v1973 = vrot.slane %v1972, 1
        %v1974 = vadd.f32 %v1972, %v1973
        %v1975 = vsel %vm1920, %v1900, 0.0
        %v1976 = vsel %vm1920, %v1901, 0.0
        %v1977 = vadd.f32 %v1975, %v1976
        %v1978 = vrot.slane %v1977, 4
        %v1979 = vadd.f32 %v1977, %v1978
        %v1980 = vrot.slane %v1979, 2
        %v1981 = vadd.f32 %v1979, %v1980
        %v1982 = vrot.slane %v1981, 1
        %v1983 = vadd.f32 %v1981, %v1982
        %v1984 = vsel %vm1920, %v1902, 0.0
        %v1985 = vsel %vm1920, %v1903, 0.0
        %v1986 = vadd.f32 %v1984, %v1985
        %v1987 = vrot.slane %v1986, 4
        %v1988 = vadd.f32 %v1986, %v1987
        %v1989 = vrot.slane %v1988, 2
        %v1990 = vadd.f32 %v1988, %v1989
        %v1991 = vrot.slane %v1990, 1
        %v1992 = vadd.f32 %v1990, %v1991
        %v1993 = vsel %vm1920, %v1904, 0.0
        %v1994 = vsel %vm1920, %v1905, 0.0
        %v1995 = vadd.f32 %v1993, %v1994
        %v1996 = vrot.slane %v1995, 4
        %v1997 = vadd.f32 %v1995, %v1996
        %v1998 = vrot.slane %v1997, 2
        %v1999 = vadd.f32 %v1997, %v1998
        %v2000 = vrot.slane %v1999, 1
        %v2001 = vadd.f32 %v1999, %v2000
        %v2002 = vsel %vm1920, %v1906, 0.0
        %v2003 = vsel %vm1920, %v1907, 0.0
        %v2004 = vadd.f32 %v2002, %v2003
        %v2005 = vrot.slane %v2004, 4
        %v2006 = vadd.f32 %v2004, %v2005
        %v2007 = vrot.slane %v2006, 2
        %v2008 = vadd.f32 %v2006, %v2007
        %v2009 = vrot.slane %v2008, 1
        %v2010 = vadd.f32 %v2008, %v2009
        %v2011 = vsel %vm1920, %v1908, 0.0
        %v2012 = vsel %vm1920, %v1909, 0.0
        %v2013 = vadd.f32 %v2011, %v2012
        %v2014 = vrot.slane %v2013, 4
        %v2015 = vadd.f32 %v2013, %v2014
        %v2016 = vrot.slane %v2015, 2
        %v2017 = vadd.f32 %v2015, %v2016
        %v2018 = vrot.slane %v2017, 1
        %v2019 = vadd.f32 %v2017, %v2018
        %v2020 = vsel %vm1920, %v1910, 0.0
        %v2021 = vsel %vm1920, %v1911, 0.0
        %v2022 = vadd.f32 %v2020, %v2021
        %v2023 = vrot.slane %v2022, 4
        %v2024 = vadd.f32 %v2022, %v2023
        %v2025 = vrot.slane %v2024, 2
        %v2026 = vadd.f32 %v2024, %v2025
        %v2027 = vrot.slane %v2026, 1
        %v2028 = vadd.f32 %v2026, %v2027
        %v2029 = vsel %vm1920, %v1912, 0.0
        %v2030 = vsel %vm1920, %v1913, 0.0
        %v2031 = vadd.f32 %v2029, %v2030
        %v2032 = vrot.slane %v2031, 4
        %v2033 = vadd.f32 %v2031, %v2032
        %v2034 = vrot.slane %v2033, 2
        %v2035 = vadd.f32 %v2033, %v2034
        %v2036 = vrot.slane %v2035, 1
        %v2037 = vadd.f32 %v2035, %v2036
        %v2038 = vsel %vm1920, %v1914, 0.0
        %v2039 = vsel %vm1920, %v1915, 0.0
        %v2040 = vadd.f32 %v2038, %v2039
        %v2041 = vrot.slane %v2040, 4
        %v2042 = vadd.f32 %v2040, %v2041
        %v2043 = vrot.slane %v2042, 2
        %v2044 = vadd.f32 %v2042, %v2043
        %v2045 = vrot.slane %v2044, 1
        %v2046 = vadd.f32 %v2044, %v2045
        %v2047 = vsel %vm1920, %v1916, 0.0
        %v2048 = vsel %vm1920, %v1917, 0.0
        %v2049 = vadd.f32 %v2047, %v2048
        %v2050 = vrot.slane %v2049, 4
        %v2051 = vadd.f32 %v2049, %v2050
        %v2052 = vrot.slane %v2051, 2
        %v2053 = vadd.f32 %v2051, %v2052
        %v2054 = vrot.slane %v2053, 1
        %v2055 = vadd.f32 %v2053, %v2054
        %v2056 = vsel %vm1920, %v1918, 0.0
        %v2057 = vsel %vm1920, %v1919, 0.0
        %v2058 = vadd.f32 %v2056, %v2057
        %v2059 = vrot.slane %v2058, 4
        %v2060 = vadd.f32 %v2058, %v2059
        %v2061 = vrot.slane %v2060, 2
        %v2062 = vadd.f32 %v2060, %v2061
        %v2063 = vrot.slane %v2062, 1
        %v2064 = vadd.f32 %v2062, %v2063
        %v2081 = vsel %vm1132, %v1938, %v1929
        %v2082 = vsel %vm1134, %v1947, %v2081
        %v2083 = vsel %vm1136, %v1956, %v2082
        %v2084 = vsel %vm1138, %v1965, %v2083
        %v2085 = vsel %vm1140, %v1974, %v2084
        %v2086 = vsel %vm1142, %v1983, %v2085
        %v2087 = vsel %vm1144, %v1992, %v2086
        %v2088 = vsel %vm1132, %v2010, %v2001
        %v2089 = vsel %vm1134, %v2019, %v2088
        %v2090 = vsel %vm1136, %v2028, %v2089
        %v2091 = vsel %vm1138, %v2037, %v2090
        %v2092 = vsel %vm1140, %v2046, %v2091
        %v2093 = vsel %vm1142, %v2055, %v2092
        %v2094 = vsel %vm1144, %v2064, %v2093
        %v2097 = vadd.f32 %v1726, %v2087
        %v2098 = vadd.f32 %v1727, %v2094
        %2099 = vst.msk [vmem:[#allocation2] sm:$0xff] %vm1920, %v2097
        %2100 = vst.msk [vmem:[#allocation2 + $0x8] sm:$0xff] %vm1920, %v2098
        %p2101 = scmp.eq.s32.totalorder %s26, 1
        // Predicated region
        $region132: #{tpu_custom_call.1} parent=118 // pred_check
          %p2102 = pneg %p2101
        $region133: #{tpu_custom_call.1} parent=118 // pred_check_branch
          %2104 = sbr.rel (%p2102) target = $region135
        $region134: #{tpu_custom_call.1} parent=118 // pred_region
          %v2105 = vld [vmem:[#allocation2] sm:$0xff]
          %v2106 = vld [vmem:[#allocation2 + $0x8] sm:$0xff]
          %v2107 = vld [vmem:[%s671] sm:$0xff]
          %v2108 = vld [vmem:[%s671 + $0x8] sm:$0xff]
          %2110 = vset.pattern.permute.xlu0 0
          %2111 = vperm.xlu0 %2110, %v2107
          %v2112 = vpop.permute.xlu0 %2111
          %2115 = vset.pattern.permute.xlu0 0
          %2116 = vperm.xlu0 %2115, %v2108
          %v2117 = vpop.permute.xlu0 %2116
          %v2119 = vmul.f32 %v2105, %v2112
          %v2120 = vmul.f32 %v2106, %v2117
          %2121 = vst.msk [vmem:[#allocation2] sm:$0xff] %vm971, %v2119
          %2122 = vst.msk [vmem:[#allocation2 + $0x8] sm:$0xff] %vm971, %v2120
          %v2123 = vld [vmem:[#allocation2] sm:$0xff]
          %v2124 = vld [vmem:[#allocation2 + $0x8] sm:$0xff]
          %v2125 = vld [vmem:[%s671] sm:$0xff]
          %v2126 = vld [vmem:[%s671 + $0x8] sm:$0xff]
          %2128 = vset.pattern.permute.xlu0 1
          %2129 = vperm.xlu0 %2128, %v2125
          %v2130 = vpop.permute.xlu0 %2129
          %2133 = vset.pattern.permute.xlu0 1
          %2134 = vperm.xlu0 %2133, %v2126
          %v2135 = vpop.permute.xlu0 %2134
          %v2137 = vmul.f32 %v2123, %v2130
          %v2138 = vmul.f32 %v2124, %v2135
          %2139 = vst.msk [vmem:[#allocation2] sm:$0xff] %vm1449, %v2137
          %2140 = vst.msk [vmem:[#allocation2 + $0x8] sm:$0xff] %vm1449, %v2138
          %v2141 = vld [vmem:[#allocation2] sm:$0xff]
          %v2142 = vld [vmem:[#allocation2 + $0x8] sm:$0xff]
          %v2143 = vld [vmem:[%s671] sm:$0xff]
          %v2144 = vld [vmem:[%s671 + $0x8] sm:$0xff]
          %2146 = vset.pattern.permute.xlu0 2
          %2147 = vperm.xlu0 %2146, %v2143
          %v2148 = vpop.permute.xlu0 %2147
          %2151 = vset.pattern.permute.xlu0 2
          %2152 = vperm.xlu0 %2151, %v2144
          %v2153 = vpop.permute.xlu0 %2152
          %v2155 = vmul.f32 %v2141, %v2148
          %v2156 = vmul.f32 %v2142, %v2153
          %2157 = vst.msk [vmem:[#allocation2] sm:$0xff] %vm1920, %v2155
          %2158 = vst.msk [vmem:[#allocation2 + $0x8] sm:$0xff] %vm1920, %v2156
          %v2159 = vld [vmem:[#allocation2] sm:$0xff]
          %v2160 = vld [vmem:[#allocation2 + $0x8] sm:$0xff]
          %v2161 = vld [vmem:[%s3] sm:$0xff]
          %v2162 = vld [vmem:[%s3 + $0x8] sm:$0xff]
          %v2163 = vld [vmem:[%s3 + $0x10] sm:$0xff]
          %v2164 = vld [vmem:[%s3 + $0x18] sm:$0xff]
          %v2165 = vld [vmem:[%s3 + $0x20] sm:$0xff]
          %v2166 = vld [vmem:[%s3 + $0x28] sm:$0xff]
          %v2167 = vld [vmem:[%s3 + $0x30] sm:$0xff]
          %v2168 = vld [vmem:[%s3 + $0x38] sm:$0xff]
          %v2169 = vld [vmem:[%s3 + $0x40] sm:$0xff]
          %v2170 = vld [vmem:[%s3 + $0x48] sm:$0xff]
          %v2171 = vld [vmem:[%s3 + $0x50] sm:$0xff]
          %v2172 = vld [vmem:[%s3 + $0x58] sm:$0xff]
          %v2173 = vld [vmem:[%s4] sm:$0x1]
          %v2175 = vlaneseq
          %v2176 = vshrl.u32 %v2175, 7
          %v2177 = vsub.s32 0, %v2176
          %v2178 = vrot.slane %v2173, %v2177
          %vm2180 = vcmask 785408
          %v2182 = vsel %vm2180, %v2159, 0
          %v2185 = vsel %vm2180, %v2160, 0
          %2187 = vmatprep.subr.mxu0 0.0
          %2188 = vmatpush1.msra.mxu0 0.0
          %2189 = vmatprep.subr.mxu0 0.0
          %2190 = vmatpush1.msra.mxu0 0.0
          %2191 = vmatprep.subr.mxu0 0.0
          %2192 = vmatpush1.msra.mxu0 0.0
          %2193 = vmatprep.subr.mxu0 0.0
          %2194 = vmatpush1.msra.mxu0 0.0
          %2195 = vmatprep.subr.mxu0 0.0
          %2196 = vmatpush1.msra.mxu0 %v2172
          %2197 = vmatprep.subr.mxu0 0.0
          %2198 = vmatpush1.msra.mxu0 %v2171
          %2199 = vmatprep.subr.mxu0 0.0
          %2200 = vmatpush1.msra.mxu0 %v2170
          %2201 = vmatprep.subr.mxu0 0.0
          %2202 = vmatpush1.msra.mxu0 %v2169
          %2203 = vmatprep.subr.mxu0 0.0
          %2204 = vmatpush1.msra.mxu0 %v2168
          %2205 = vmatprep.subr.mxu0 0.0
          %2206 = vmatpush1.msra.mxu0 %v2167
          %2207 = vmatprep.subr.mxu0 0.0
          %2208 = vmatpush1.msra.mxu0 %v2166
          %2209 = vmatprep.subr.mxu0 0.0
          %2210 = vmatpush1.msra.mxu0 %v2165
          %2211 = vmatprep.subr.mxu0 0.0
          %2212 = vmatpush1.msra.mxu0 %v2164
          %2213 = vmatprep.subr.mxu0 0.0
          %2214 = vmatpush1.msra.mxu0 %v2163
          %2215 = vmatprep.subr.mxu0 0.0
          %2216 = vmatpush1.msra.mxu0 %v2162
          %2217 = vmatprep.subr.mxu0 0.0
          %2218 = vmatpush1.msra.mxu0 %v2161
          %2219 = vmatprep.subr.mxu0 0.0
          %2220 = vmatpush2.msra.mxu0 0.0
          %2221 = vmatprep.subr.mxu0 0.0
          %2222 = vmatpush2.msra.mxu0 0.0
          %2223 = vmatprep.subr.mxu0 0.0
          %2224 = vmatpush2.msra.mxu0 0.0
          %2225 = vmatprep.subr.mxu0 0.0
          %2226 = vmatpush2.msra.mxu0 0.0
          %2227 = vmatprep.subr.mxu0 0.0
          %2228 = vmatpush2.msra.mxu0 0.0
          %2229 = vmatprep.subr.mxu0 0.0
          %2230 = vmatpush2.msra.mxu0 0.0
          %2231 = vmatprep.subr.mxu0 0.0
          %2232 = vmatpush2.msra.mxu0 0.0
          %2233 = vmatprep.subr.mxu0 0.0
          %2234 = vmatpush2.msra.mxu0 0.0
          %2235 = vmatprep.subr.mxu0 0.0
          %2236 = vmatpush2.msra.mxu0 0.0
          %2237 = vmatprep.subr.mxu0 0.0
          %2238 = vmatpush2.msra.mxu0 0.0
          %2239 = vmatprep.subr.mxu0 0.0
          %2240 = vmatpush2.msra.mxu0 0.0
          %2241 = vmatprep.subr.mxu0 0.0
          %2242 = vmatpush2.msra.mxu0 0.0
          %2243 = vmatprep.subr.mxu0 0.0
          %2244 = vmatpush2.msra.mxu0 0.0
          %2245 = vmatprep.subr.mxu0 0.0
          %2246 = vmatpush2.msra.mxu0 0.0
          %2247 = vmatprep.subr.mxu0 0.0
          %2248 = vmatpush2.msra.mxu0 0.0
          %2249 = vmatprep.subr.mxu0 0.0
          %2250 = vmatpush2.msra.mxu0 0.0
          %2251 = vmatprep.mubr.f32.mxu0 0.0
          %2252 = vmatmul.mubr.f32.gmra.mxu0 %v2182
          %v2253 = vpop.f32.mrf.mxu0
          %v2254 = vadd.f32 %v2178, %v2253
          %v2255 = vpop.f32.mrf.mxu0
          %2256 = vmatprep.mubr.f32.mxu0 0.0
          %2257 = vmatmul.mubr.f32.gmra.mxu0 %v2185
          %v2258 = vpop.f32.mrf.mxu0
          %v2259 = vadd.f32 %v2178, %v2258
          %v2260 = vpop.f32.mrf.mxu0
          %2261 = vdwg.mxu0
          %v2262 = vmax.f32 %v2254, 0.0
          %v2263 = vmax.f32 %v2259, 0.0
          %v2264 = vld [vmem:[%s5] sm:$0xff]
          %v2265 = vld [vmem:[%s5 + $0x8] sm:$0xff]
          %v2266 = vld [vmem:[%s5 + $0x10] sm:$0xff]
          %v2267 = vld [vmem:[%s5 + $0x18] sm:$0xff]
          %v2268 = vld [vmem:[%s5 + $0x20] sm:$0xff]
          %v2269 = vld [vmem:[%s5 + $0x28] sm:$0xff]
          %v2270 = vld [vmem:[%s5 + $0x30] sm:$0xff]
          %v2271 = vld [vmem:[%s5 + $0x38] sm:$0xff]
          %v2272 = vld [vmem:[%s5 + $0x40] sm:$0xff]
          %v2273 = vld [vmem:[%s5 + $0x48] sm:$0xff]
          %v2274 = vld [vmem:[%s5 + $0x50] sm:$0xff]
          %v2275 = vld [vmem:[%s5 + $0x58] sm:$0xff]
          %v2276 = vld [vmem:[%s5 + $0x60] sm:$0xff]
          %v2277 = vld [vmem:[%s5 + $0x68] sm:$0xff]
          %v2278 = vld [vmem:[%s5 + $0x70] sm:$0xff]
          %v2279 = vld [vmem:[%s5 + $0x78] sm:$0xff]
          %v2280 = vld [vmem:[%s6] sm:$0x1]
          %v2282 = vlaneseq
          %v2283 = vshrl.u32 %v2282, 7
          %v2284 = vsub.s32 0, %v2283
          %v2285 = vrot.slane %v2280, %v2284
          %2287 = vmatprep.subr.mxu0 0.0
          %2288 = vmatpush1.msra.mxu0 %v2279
          %2289 = vmatprep.subr.mxu0 0.0
          %2290 = vmatpush1.msra.mxu0 %v2278
          %2291 = vmatprep.subr.mxu0 0.0
          %2292 = vmatpush1.msra.mxu0 %v2277
          %2293 = vmatprep.subr.mxu0 0.0
          %2294 = vmatpush1.msra.mxu0 %v2276
          %2295 = vmatprep.subr.mxu0 0.0
          %2296 = vmatpush1.msra.mxu0 %v2275
          %2297 = vmatprep.subr.mxu0 0.0
          %2298 = vmatpush1.msra.mxu0 %v2274
          %2299 = vmatprep.subr.mxu0 0.0
          %2300 = vmatpush1.msra.mxu0 %v2273
          %2301 = vmatprep.subr.mxu0 0.0
          %2302 = vmatpush1.msra.mxu0 %v2272
          %2303 = vmatprep.subr.mxu0 0.0
          %2304 = vmatpush1.msra.mxu0 %v2271
          %2305 = vmatprep.subr.mxu0 0.0
          %2306 = vmatpush1.msra.mxu0 %v2270
          %2307 = vmatprep.subr.mxu0 0.0
          %2308 = vmatpush1.msra.mxu0 %v2269
          %2309 = vmatprep.subr.mxu0 0.0
          %2310 = vmatpush1.msra.mxu0 %v2268
          %2311 = vmatprep.subr.mxu0 0.0
          %2312 = vmatpush1.msra.mxu0 %v2267
          %2313 = vmatprep.subr.mxu0 0.0
          %2314 = vmatpush1.msra.mxu0 %v2266
          %2315 = vmatprep.subr.mxu0 0.0
          %2316 = vmatpush1.msra.mxu0 %v2265
          %2317 = vmatprep.subr.mxu0 0.0
          %2318 = vmatpush1.msra.mxu0 %v2264
          %2319 = vmatprep.subr.mxu0 0.0
          %2320 = vmatpush2.msra.mxu0 0.0
          %2321 = vmatprep.subr.mxu0 0.0
          %2322 = vmatpush2.msra.mxu0 0.0
          %2323 = vmatprep.subr.mxu0 0.0
          %2324 = vmatpush2.msra.mxu0 0.0
          %2325 = vmatprep.subr.mxu0 0.0
          %2326 = vmatpush2.msra.mxu0 0.0
          %2327 = vmatprep.subr.mxu0 0.0
          %2328 = vmatpush2.msra.mxu0 0.0
          %2329 = vmatprep.subr.mxu0 0.0
          %2330 = vmatpush2.msra.mxu0 0.0
          %2331 = vmatprep.subr.mxu0 0.0
          %2332 = vmatpush2.msra.mxu0 0.0
          %2333 = vmatprep.subr.mxu0 0.0
          %2334 = vmatpush2.msra.mxu0 0.0
          %2335 = vmatprep.subr.mxu0 0.0
          %2336 = vmatpush2.msra.mxu0 0.0
          %2337 = vmatprep.subr.mxu0 0.0
          %2338 = vmatpush2.msra.mxu0 0.0
          %2339 = vmatprep.subr.mxu0 0.0
          %2340 = vmatpush2.msra.mxu0 0.0
          %2341 = vmatprep.subr.mxu0 0.0
          %2342 = vmatpush2.msra.mxu0 0.0
          %2343 = vmatprep.subr.mxu0 0.0
          %2344 = vmatpush2.msra.mxu0 0.0
          %2345 = vmatprep.subr.mxu0 0.0
          %2346 = vmatpush2.msra.mxu0 0.0
          %2347 = vmatprep.subr.mxu0 0.0
          %2348 = vmatpush2.msra.mxu0 0.0
          %2349 = vmatprep.subr.mxu0 0.0
          %2350 = vmatpush2.msra.mxu0 0.0
          %2351 = vmatprep.mubr.f32.mxu0 0.0
          %2352 = vmatmul.mubr.f32.gmra.mxu0 %v2262
          %v2353 = vpop.f32.mrf.mxu0
          %v2354 = vadd.f32 %v2285, %v2353
          %v2355 = vpop.f32.mrf.mxu0
          %2356 = vmatprep.mubr.f32.mxu0 0.0
          %2357 = vmatmul.mubr.f32.gmra.mxu0 %v2263
          %v2358 = vpop.f32.mrf.mxu0
          %v2359 = vadd.f32 %v2285, %v2358
          %v2360 = vpop.f32.mrf.mxu0
          %2361 = vdwg.mxu0
          %2362 = vst [vmem:[%s662] sm:$0xff] %v2354
          %2363 = vst [vmem:[%s662 + $0x8] sm:$0xff] %v2359
        $region135: #{tpu_custom_call.1} parent=118 // pred_fallthru
          _
        %s2364 = sand.u32 %s207, 1
        %s2365 = scalar_lea.sflag [#allocation6], %s2364
        %s2366 = sand.u32 %s207, 1
        %s2367 = smul.addr %s2366, 16
        %s2368 = scalar_lea.vmem [#allocation5], %s2367
        // Predicated region
        $region136: #{tpu_custom_call.1} parent=118 // pred_check
          %p2369 = pneg %p217
        $region137: #{tpu_custom_call.1} parent=118 // pred_check_branch
          %2371 = sbr.rel (%p2369) target = $region139
        $region138: #{tpu_custom_call.1} parent=118 // pred_region
          %s2372 = smul.u32 2, %s25
          %s2374 = ssub.s32 256, 256
          %2375 = vsyncadd %s2365, %s2374
          %s2376 = smul.addr %s2372, 128
          %s2377 = scalar_lea.hbm %s7, %s2376
          %s2378 = sshll.u32 %s2368, 4
          %s2379 = int_to_ptr.vmem [resolvable:$true] %s2378
          %2384 = dma.vmem_to_hbm [thread:$0]  %s2379, 256, %s2377, %s2365, 128, 128, 8
        $region139: #{tpu_custom_call.1} parent=118 // pred_fallthru
          _
      $region119: #{tpu_custom_call.1} parent=5 // pred_fallthru
        _
      %p2385 = scmp.le.s32.totalorder 2, %s16
      // Predicated region
      $region140: #{tpu_custom_call.1} parent=5 // pred_check
        %p2386 = pneg %p2385
      $region141: #{tpu_custom_call.1} parent=5 // pred_check_branch
        %2388 = sbr.rel (%p2386) target = $region143
      $region142: #{tpu_custom_call.1} parent=5 // pred_region
        %s2389 = ssub.s32 %s16, 2
        // Predicated region
        $region144: #{tpu_custom_call.1} parent=142 // pred_check
          %p2390 = pneg %p223
        $region145: #{tpu_custom_call.1} parent=142 // pred_check_branch
          %2392 = sbr.rel (%p2390) target = $region147
        $region146: #{tpu_custom_call.1} parent=142 // pred_region
          %s2393 = sand.u32 %s208, 1
          %s2394 = scalar_lea.sflag [#allocation6], %s2393
          %s2395 = sand.u32 %s208, 1
          %s2396 = smul.addr %s2395, 16
          %s2397 = scalar_lea.vmem [#allocation5], %s2396
          %2398 = dma.done %s2394, 256
        $region147: #{tpu_custom_call.1} parent=142 // pred_fallthru
          _
      $region143: #{tpu_custom_call.1} parent=5 // pred_fallthru
        _
    $region6: #{tpu_custom_call.1} parent=1 // loop_footer
      %s20 = sadd.s32 1, %s16
    $region7: #{tpu_custom_call.1} parent=1 // loop_footer_branch
      %15 = sbr.rel target = $region3
    $region8: #{tpu_custom_call.1} parent=1 // loop_exit
      _
    %2399 = vsyncpa [#allocation6], 1
    %s2400 = scalar_lea.sflag [#allocation6], 1
    %2401 = vsyncpa %s2400, 1

</llo_original>
